<compile_context>
chip_gen: v7x
topology: tpu7x:2x2x1
jax: 0.10.0
libtpu: 0.0.40
codegen_flags: <defaults>
</compile_context>

<pallas_src>
import jax
import jax.numpy as jnp
from jax import lax
from jax.experimental import pallas as pl
from jax.experimental.pallas import tpu as pltpu


H1_CHUNK = 256  # layer-1 output-feature chunk (divides 1024)


def mlp_kernel(xT_ref,    # (D_in, tile_m)  bf16   batch on lanes
               w1T_ref,   # (H1, D_in)      bf16   layer-1 weight, feature-major
               wt_ref,    # (H1, 1)         f32    folded tail column (w2@w3@w4@w5)
               bt_ref,    # (1, 1)          f32    folded total bias (incl. b1)
               o_ref):    # (1, tile_m)     f32    lane-dense output
    xT = xT_ref[...]                              # (D_in, tile_m) bf16
    tile_m = xT.shape[1]
    n_chunks = w1T_ref.shape[0] // H1_CHUNK

    def chunk_body(c, acc):
        off = pl.multiple_of(c * H1_CHUNK, H1_CHUNK)
        w_chunk = w1T_ref[pl.ds(off, H1_CHUNK), :]     # (CH, D_in) bf16
        wt_chunk = wt_ref[pl.ds(off, H1_CHUNK), :]     # (CH, 1)    f32
        # Layer 1 chunk on the MXU (f32 accumulation).
        h = jnp.dot(w_chunk, xT, preferred_element_type=jnp.float32)  # (CH, tile_m)
        # Folded tail for this chunk: VPU mul + sublane-axis reduce (no M=1 matmul).
        return acc + jnp.sum(h * wt_chunk, axis=0, keepdims=True)

    acc0 = jnp.zeros((1, tile_m), jnp.float32)
    acc = lax.fori_loop(0, n_chunks, chunk_body, acc0, unroll=True)

    o_ref[...] = (acc + bt_ref[...]).astype(o_ref.dtype)  # (1, tile_m): unmasked vst


def _round_up(n, m):
    return ((n + m - 1) // m) * m


def mlp_forward(x, params, *, tile_m=2048):
    """x: (B, input_size) float32.  params: list of (W, b), W (in,out), b (1,out)."""
    B, D_in = x.shape
    (w1, b1), (w2, b2), (w3, b3), (w4, b4), (w5, b5) = params
    H1 = w1.shape[1]                                   # 1024
    assert H1 % H1_CHUNK == 0, "H1 must be a multiple of the chunk size"

    # ---- batch tile selection -------------------------------------------------
    tile_m = max(128, _round_up(tile_m, 128))
    b_ceil = _round_up(B, 128)
    tile_m = min(tile_m, b_ceil)
    if b_ceil >= 2 * 128:
        # Guarantee >=2 grid steps so the "parallel" axis shards across both
        # v7x TensorCores (no cost on single-TC v5e/v6e).
        tile_m = min(tile_m, max(128, (b_ceil // 2) // 128 * 128))
    num_tiles = pl.cdiv(B, tile_m)
    B_pad = num_tiles * tile_m

    # ---- wrapper-side parameter prep (one-time, all folds in f32) --------------
    # Eval mode: every Dropout is identity -> layers 2..5 collapse to one column.
    wt = w2 @ w3 @ w4 @ w5                                          # (H1, 1)
    bt = b1 @ wt + ((b2 @ w3 + b3) @ w4 + b4) @ w5 + b5             # (1, 1)

    w1T = w1.T.astype(jnp.bfloat16)                                  # (H1, D_in)
    wt = wt.astype(jnp.float32)
    bt = bt.astype(jnp.float32)

    xT = x.T.astype(jnp.bfloat16)                                    # (D_in, B)
    if B_pad != B:
        xT = jnp.pad(xT, ((0, 0), (0, B_pad - B)))

    # ---- specs ------------------------------------------------------------------
    def resident(shape):                       # whole array stays in VMEM
        return pl.BlockSpec(shape, lambda i: (0, 0))

    in_specs = [
        pl.BlockSpec((D_in, tile_m), lambda i: (0, i)),   # x^T batch tile
        resident(w1T.shape),
        resident(wt.shape),
        resident(bt.shape),
    ]
    out_specs = pl.BlockSpec((1, tile_m), lambda i: (0, i))   # lane-dense output

    flops = 2 * B_pad * H1 * (D_in + 1)                       # matmul + mul/reduce tail
    bytes_accessed = (
        D_in * B_pad * 2 + B_pad * 4                          # x^T in (bf16), y out (f32)
        + H1 * D_in * 2                                       # bf16 layer-1 weight
        + (H1 + 1) * 4                                        # f32 folded tail + bias
    )

    out_row = pl.pallas_call(
        mlp_kernel,
        out_shape=jax.ShapeDtypeStruct((1, B_pad), jnp.float32),
        grid_spec=pltpu.PrefetchScalarGridSpec(
            num_scalar_prefetch=0,
            grid=(num_tiles,),
            in_specs=in_specs,
            out_specs=out_specs,
        ),
        compiler_params=pltpu.CompilerParams(
            dimension_semantics=("parallel",),                # shardable across TCs
        ),
        cost_estimate=pl.CostEstimate(
            flops=flops, transcendentals=0, bytes_accessed=bytes_accessed),
    )(xT, w1T, wt, bt)

    return out_row[0, :B].reshape(B, 1)


def init_params(key, input_size):
    """Deterministic init mimicking PyTorch nn.Linear default (U[-1/sqrt(fan_in), +])."""
    dims = [input_size, 1024, 128, 64, 16, 1]
    params = []
    for i in range(len(dims) - 1):
        fan_in, fan_out = dims[i], dims[i + 1]
        key, kw, kb = jax.random.split(key, 3)
        bound = 1.0 / (fan_in ** 0.5)
        w = jax.random.uniform(kw, (fan_in, fan_out), jnp.float32, -bound, bound)
        b = jax.random.uniform(kb, (1, fan_out), jnp.float32, -bound, bound)
        params.append((w, b))
    return params


def mlp_reference(x, params):
    """Exact f32 5-layer chain (eval mode: dropout = identity)."""
    h = x
    for w, b in params:
        h = h @ w + b
    return h


def mlp_reference_matched(x, params):
    """Same math as the kernel: f32-folded layers 2..5 + bias, bf16 only on x/w1."""
    (w1, b1), (w2, b2), (w3, b3), (w4, b4), (w5, b5) = params
    wt = w2 @ w3 @ w4 @ w5
    bt = b1 @ wt + ((b2 @ w3 + b3) @ w4 + b4) @ w5 + b5
    bf = jnp.bfloat16
    h1 = jnp.dot(x.astype(bf), w1.astype(bf), preferred_element_type=jnp.float32)
    return h1 @ wt + bt


if __name__ == "__main__":
    key = jax.random.PRNGKey(0)
    batch, input_size = 256, 32          # small demo shapes; clamp -> tile_m=128, grid=(2,)

    kx, kp = jax.random.split(key)
    x = jax.random.normal(kx, (batch, input_size), jnp.float32)
    params = init_params(kp, input_size)

    out = jax.block_until_ready(mlp_forward(x, params))
    assert out.shape == (batch, 1), out.shape

    ref_matched = mlp_reference_matched(x, params)   # same bf16 quantization as kernel
    ref_f32 = mlp_reference(x, params)               # exact f32 module semantics

    err_m = float(jnp.max(jnp.abs(out - ref_matched)))
    err_f = float(jnp.max(jnp.abs(out - ref_f32)))
    assert jnp.allclose(out, ref_matched, atol=1e-3, rtol=1e-3), (
        f"matched-precision max abs err {err_m}")
    # Loose bound vs. pure-f32 reference accounts for the bf16 cast of x / w1.
    assert jnp.allclose(out, ref_f32, atol=2e-2, rtol=2e-2), (
        f"f32-reference max abs err {err_f}")

    print("KERNEL_OK")
</pallas_src>

<mosaic_0001>
module attributes {stable_mosaic.version = 11 : i64} {
  func.func @mlp_kernel(%arg0: i32, %arg1: memref<32x128xbf16, #tpu.memory_space<vmem>>, %arg2: memref<1024x32xbf16, #tpu.memory_space<vmem>>, %arg3: memref<1024x1xf32, #tpu.memory_space<vmem>>, %arg4: memref<1x1xf32, #tpu.memory_space<vmem>>, %arg5: memref<1x128xf32, #tpu.memory_space<vmem>>) attributes {dimension_semantics = [#tpu.dimension_semantics<parallel>], iteration_bounds = array<i64: 2>, scalar_prefetch = 0 : i64, scratch_operands = 0 : i64, tpu.core_type = #tpu.core_type<tc>, window_params = [{transform_indices = @transform_0, window_bounds = array<i64: 32, 128>}, {pipeline_mode = #tpu.pipeline_mode<synchronous>, transform_indices = @transform_1, window_bounds = array<i64: 1024, 32>}, {pipeline_mode = #tpu.pipeline_mode<synchronous>, transform_indices = @transform_2, window_bounds = array<i64: 1024, 1>}, {pipeline_mode = #tpu.pipeline_mode<synchronous>, transform_indices = @transform_3, window_bounds = array<i64: 1, 1>}, {transform_indices = @transform_4, window_bounds = array<i64: 1, 128>}]} {
    %c0 = arith.constant 0 : index
    %c0_0 = arith.constant 0 : index
    %0 = vector.load %arg1[%c0, %c0_0] : memref<32x128xbf16, #tpu.memory_space<vmem>>, vector<32x128xbf16>
    %cst = arith.constant 0.000000e+00 : f32
    %1 = vector.broadcast %cst : f32 to vector<1x128xf32>
    %c0_i32 = arith.constant 0 : i32
    %c256_i32 = arith.constant 256 : i32
    %2 = arith.muli %c0_i32, %c256_i32 : i32
    %3 = tpu.assume_multiple %2, 256 : i32
    %4 = arith.index_cast %3 : i32 to index
    %c0_1 = arith.constant 0 : index
    %5 = vector.load %arg2[%4, %c0_1] : memref<1024x32xbf16, #tpu.memory_space<vmem>>, vector<256x32xbf16>
    %6 = arith.index_cast %3 : i32 to index
    %c0_2 = arith.constant 0 : index
    %7 = vector.load %arg3[%6, %c0_2] : memref<1024x1xf32, #tpu.memory_space<vmem>>, vector<256x1xf32>
    %cst_3 = arith.constant dense<0.000000e+00> : vector<256x128xf32>
    %8 = tpu.matmul %5, %0, %cst_3 {dimension_numbers = #tpu.dot_dimension_numbers<[1], [0], [0], [1], [0, 0, 1, 1], [], []>} : vector<256x32xbf16>, vector<32x128xbf16>, vector<256x128xf32> -> vector<256x128xf32>
    %9 = vector.broadcast %7 : vector<256x1xf32> to vector<256x128xf32>
    %10 = arith.mulf %8, %9 : vector<256x128xf32>
    %cst_4 = arith.constant dense<0.000000e+00> : vector<128xf32>
    %11 = vector.multi_reduction <add>, %10, %cst_4 [0] : vector<256x128xf32> to vector<128xf32>
    %12 = vector.shape_cast %11 : vector<128xf32> to vector<1x128xf32>
    %13 = arith.addf %1, %12 : vector<1x128xf32>
    %c1_i32 = arith.constant 1 : i32
    %c256_i32_5 = arith.constant 256 : i32
    %14 = arith.muli %c1_i32, %c256_i32_5 : i32
    %15 = tpu.assume_multiple %14, 256 : i32
    %16 = arith.index_cast %15 : i32 to index
    %c0_6 = arith.constant 0 : index
    %17 = vector.load %arg2[%16, %c0_6] : memref<1024x32xbf16, #tpu.memory_space<vmem>>, vector<256x32xbf16>
    %18 = arith.index_cast %15 : i32 to index
    %c0_7 = arith.constant 0 : index
    %19 = vector.load %arg3[%18, %c0_7] : memref<1024x1xf32, #tpu.memory_space<vmem>>, vector<256x1xf32>
    %cst_8 = arith.constant dense<0.000000e+00> : vector<256x128xf32>
    %20 = tpu.matmul %17, %0, %cst_8 {dimension_numbers = #tpu.dot_dimension_numbers<[1], [0], [0], [1], [0, 0, 1, 1], [], []>} : vector<256x32xbf16>, vector<32x128xbf16>, vector<256x128xf32> -> vector<256x128xf32>
    %21 = vector.broadcast %19 : vector<256x1xf32> to vector<256x128xf32>
    %22 = arith.mulf %20, %21 : vector<256x128xf32>
    %cst_9 = arith.constant dense<0.000000e+00> : vector<128xf32>
    %23 = vector.multi_reduction <add>, %22, %cst_9 [0] : vector<256x128xf32> to vector<128xf32>
    %24 = vector.shape_cast %23 : vector<128xf32> to vector<1x128xf32>
    %25 = arith.addf %13, %24 : vector<1x128xf32>
    %c2_i32 = arith.constant 2 : i32
    %c256_i32_10 = arith.constant 256 : i32
    %26 = arith.muli %c2_i32, %c256_i32_10 : i32
    %27 = tpu.assume_multiple %26, 256 : i32
    %28 = arith.index_cast %27 : i32 to index
    %c0_11 = arith.constant 0 : index
    %29 = vector.load %arg2[%28, %c0_11] : memref<1024x32xbf16, #tpu.memory_space<vmem>>, vector<256x32xbf16>
    %30 = arith.index_cast %27 : i32 to index
    %c0_12 = arith.constant 0 : index
    %31 = vector.load %arg3[%30, %c0_12] : memref<1024x1xf32, #tpu.memory_space<vmem>>, vector<256x1xf32>
    %cst_13 = arith.constant dense<0.000000e+00> : vector<256x128xf32>
    %32 = tpu.matmul %29, %0, %cst_13 {dimension_numbers = #tpu.dot_dimension_numbers<[1], [0], [0], [1], [0, 0, 1, 1], [], []>} : vector<256x32xbf16>, vector<32x128xbf16>, vector<256x128xf32> -> vector<256x128xf32>
    %33 = vector.broadcast %31 : vector<256x1xf32> to vector<256x128xf32>
    %34 = arith.mulf %32, %33 : vector<256x128xf32>
    %cst_14 = arith.constant dense<0.000000e+00> : vector<128xf32>
    %35 = vector.multi_reduction <add>, %34, %cst_14 [0] : vector<256x128xf32> to vector<128xf32>
    %36 = vector.shape_cast %35 : vector<128xf32> to vector<1x128xf32>
    %37 = arith.addf %25, %36 : vector<1x128xf32>
    %c3_i32 = arith.constant 3 : i32
    %c256_i32_15 = arith.constant 256 : i32
    %38 = arith.muli %c3_i32, %c256_i32_15 : i32
    %39 = tpu.assume_multiple %38, 256 : i32
    %40 = arith.index_cast %39 : i32 to index
    %c0_16 = arith.constant 0 : index
    %41 = vector.load %arg2[%40, %c0_16] : memref<1024x32xbf16, #tpu.memory_space<vmem>>, vector<256x32xbf16>
    %42 = arith.index_cast %39 : i32 to index
    %c0_17 = arith.constant 0 : index
    %43 = vector.load %arg3[%42, %c0_17] : memref<1024x1xf32, #tpu.memory_space<vmem>>, vector<256x1xf32>
    %cst_18 = arith.constant dense<0.000000e+00> : vector<256x128xf32>
    %44 = tpu.matmul %41, %0, %cst_18 {dimension_numbers = #tpu.dot_dimension_numbers<[1], [0], [0], [1], [0, 0, 1, 1], [], []>} : vector<256x32xbf16>, vector<32x128xbf16>, vector<256x128xf32> -> vector<256x128xf32>
    %45 = vector.broadcast %43 : vector<256x1xf32> to vector<256x128xf32>
    %46 = arith.mulf %44, %45 : vector<256x128xf32>
    %cst_19 = arith.constant dense<0.000000e+00> : vector<128xf32>
    %47 = vector.multi_reduction <add>, %46, %cst_19 [0] : vector<256x128xf32> to vector<128xf32>
    %48 = vector.shape_cast %47 : vector<128xf32> to vector<1x128xf32>
    %49 = arith.addf %37, %48 : vector<1x128xf32>
    %c4_i32 = arith.constant 4 : i32
    %c0_20 = arith.constant 0 : index
    %c0_21 = arith.constant 0 : index
    %50 = vector.load %arg4[%c0_20, %c0_21] : memref<1x1xf32, #tpu.memory_space<vmem>>, vector<1x1xf32>
    %51 = vector.broadcast %50 : vector<1x1xf32> to vector<1x128xf32>
    %52 = arith.addf %49, %51 : vector<1x128xf32>
    %c0_22 = arith.constant 0 : index
    %c0_23 = arith.constant 0 : index
    %53 = vector.load %arg5[%c0_22, %c0_23] : memref<1x128xf32, #tpu.memory_space<vmem>>, vector<1x128xf32>
    tpu.vector_store %arg5[%c0_22, %c0_23], %52 {strides = array<i32>} : memref<1x128xf32, #tpu.memory_space<vmem>>, vector<1x128xf32>,
    return
  }
  func.func @transform_0(%arg0: i32) -> (i32, i32) {
    %c0_i32 = arith.constant 0 : i32
    %c0_i32_0 = arith.constant 0 : i32
    return %c0_i32, %arg0 : i32, i32
  }
  func.func @transform_1(%arg0: i32) -> (i32, i32) {
    %c0_i32 = arith.constant 0 : i32
    %c0_i32_0 = arith.constant 0 : i32
    %c0_i32_1 = arith.constant 0 : i32
    return %c0_i32, %c0_i32_0 : i32, i32
  }
  func.func @transform_2(%arg0: i32) -> (i32, i32) {
    %c0_i32 = arith.constant 0 : i32
    %c0_i32_0 = arith.constant 0 : i32
    %c0_i32_1 = arith.constant 0 : i32
    return %c0_i32, %c0_i32_0 : i32, i32
  }
  func.func @transform_3(%arg0: i32) -> (i32, i32) {
    %c0_i32 = arith.constant 0 : i32
    %c0_i32_0 = arith.constant 0 : i32
    %c0_i32_1 = arith.constant 0 : i32
    return %c0_i32, %c0_i32_0 : i32, i32
  }
  func.func @transform_4(%arg0: i32) -> (i32, i32) {
    %c0_i32 = arith.constant 0 : i32
    %c0_i32_0 = arith.constant 0 : i32
    return %c0_i32, %arg0 : i32, i32
  }
}

</mosaic_0001>

<llo_original>
// kernel: tpu_custom_call.1
$region0: #{tpu_custom_call.1}
  #allocation0 [shape = 'u32[]', space=smem, size = 0x4, offset = 0x4, fixed_abs, tag = 'smem constant byte address 0x4 - core index']
  #allocation1 [shape = 'u32[144,128]{1,0:T(1,128)}', space=vmem, size = 0x12000, scoped, tag = 'internal scratch']
  #allocation2 [shape = 'f32[1,1]{1,0:T(1,128)S(1)}', space=vmem, size = 0x200, scoped, tag = 'scoped memory for tpu_custom_call.1']
  %s0 = inlined_call_operand.vmem [shape: bf16[32,256], index: 0, kind: input, shape index: {}]
  %s1 = inlined_call_operand.vmem [shape: bf16[1024,32], index: 1, kind: input, shape index: {}]
  %s2 = inlined_call_operand.vmem [shape: f32[1024,1], index: 2, kind: input, shape index: {}]
  %s3 = inlined_call_operand.<no memory space> [shape: f32[1,1], index: 3, kind: input, shape index: {}]
  %s4 = inlined_call_operand.hbm [shape: f32[1,256], index: 4, kind: output, shape index: {}]
  %s5 = sld [smem:[#allocation0]]
  $region90: #{tpu_custom_call.1} parent=0
    _
  %s7 = ssub.s32 1, %s5
  %s8 = scalar_select 0, %s7, %s5
  %v9 = vstv %s3
  %10 = vst [vmem:[#allocation2] sm:$0x1] %v9
  $region1: #{tpu_custom_call.1} parent=0
    #allocation3 [shape = 'u8[16384]{0}', space=vmem, size = 0x4000, scoped, tag = 'input window, operand 0']
    #allocation4 [shape = 'u8[1024]{0}', space=vmem, size = 0x400, scoped, tag = 'output window, operand 0']
    #allocation5 [shape = 's32[2]{0}', space=sflag, size = 0x8, scoped, tag = 'scoped memory for tpu_custom_call.1']
    %11 = vsyncpa [#allocation5], 0
    %s12 = scalar_lea.sflag [#allocation5], 1
    %13 = vsyncpa %s12, 0
    loop: start=0, step=1, limit=4
    $region2: #{tpu_custom_call.1} parent=1 // loop_pre_header
      _
    $region3: #{tpu_custom_call.1} parent=1 // loop_header
      %s15 = sphi 0, %s19
      %p16 = scmp.ge.s32.totalorder %s15, 4
      %s25 = sphi 0, %s27
      %s28 = sphi 0, %s25
      %s29 = sphi 0, %s28
      %s45 = sphi 0, %s29
      %s49 = sphi 0, %s49
      %s51 = sphi 0, %s49
      %s52 = sphi 0, %s51
      %s66 = sphi 0, %s52
      %s70 = sphi 0, %s70
      %s72 = sphi 0, %s70
      %s73 = sphi 0, %s72
      %s87 = sphi 0, %s73
      %s91 = sphi 0, %s91
      %s93 = sphi 0, %s91
      %s94 = sphi 0, %s93
      %s108 = sphi 0, %s94
      %s114 = sphi 0, %s116
      %s117 = sphi 0, %s114
      %s118 = sphi 0, %s117
      %s134 = sphi 0, %s118
    $region4: #{tpu_custom_call.1} parent=1 // loop_header_branch
      %18 = sbr.rel (%p16) target = $region8
    $region5: #{tpu_custom_call.1} parent=1 // loop_body
      %s20 = ssub.s32 %s15, 1
      %s21 = ssub.s32 %s15, 2
      %s22 = sadd.s32 %s15, 1
      %s23 = ssub.s32 %s15, %s22
      %p24 = scmp.eq.s32.totalorder %s23, 0
      %s26 = sadd.s32 %s25, 1
      %s27 = scalar_select %p24, %s25, %s26
      %p30 = pneg %p24
      %p31 = scmp.eq.s32.totalorder %s15, 1
      %p32 = por %p30, %p31
      %p33 = scmp.ne.s32.totalorder %s25, %s28
      %p34 = scmp.eq.s32.totalorder %s15, 0
      %p35 = por %p33, %p34
      %p36 = scmp.ne.s32.totalorder %s25, %s28
      %p37 = scmp.eq.s32.totalorder %s20, 1
      %p38 = por %p36, %p37
      %p39 = scmp.ne.s32.totalorder %s28, %s29
      %p40 = scmp.eq.s32.totalorder %s20, 0
      %p41 = por %p39, %p40
      %p42 = scmp.ne.s32.totalorder %s28, %s29
      %p43 = scmp.eq.s32.totalorder %s21, 1
      %p44 = por %p42, %p43
      %p46 = scmp.ne.s32.totalorder %s29, %s45
      %p47 = scmp.eq.s32.totalorder %s21, 0
      %p48 = por %p46, %p47
      %s50 = sadd.s32 %s49, 1
      %p53 = scmp.eq.s32.totalorder %s15, 1
      %p54 = scmp.ne.s32.totalorder %s49, %s51
      %p55 = scmp.eq.s32.totalorder %s15, 0
      %p56 = por %p54, %p55
      %p57 = scmp.ne.s32.totalorder %s49, %s51
      %p58 = scmp.eq.s32.totalorder %s20, 1
      %p59 = por %p57, %p58
      %p60 = scmp.ne.s32.totalorder %s51, %s52
      %p61 = scmp.eq.s32.totalorder %s20, 0
      %p62 = por %p60, %p61
      %p63 = scmp.ne.s32.totalorder %s51, %s52
      %p64 = scmp.eq.s32.totalorder %s21, 1
      %p65 = por %p63, %p64
      %p67 = scmp.ne.s32.totalorder %s52, %s66
      %p68 = scmp.eq.s32.totalorder %s21, 0
      %p69 = por %p67, %p68
      %s71 = sadd.s32 %s70, 1
      %p74 = scmp.eq.s32.totalorder %s15, 1
      %p75 = scmp.ne.s32.totalorder %s70, %s72
      %p76 = scmp.eq.s32.totalorder %s15, 0
      %p77 = por %p75, %p76
      %p78 = scmp.ne.s32.totalorder %s70, %s72
      %p79 = scmp.eq.s32.totalorder %s20, 1
      %p80 = por %p78, %p79
      %p81 = scmp.ne.s32.totalorder %s72, %s73
      %p82 = scmp.eq.s32.totalorder %s20, 0
      %p83 = por %p81, %p82
      %p84 = scmp.ne.s32.totalorder %s72, %s73
      %p85 = scmp.eq.s32.totalorder %s21, 1
      %p86 = por %p84, %p85
      %p88 = scmp.ne.s32.totalorder %s73, %s87
      %p89 = scmp.eq.s32.totalorder %s21, 0
      %p90 = por %p88, %p89
      %s92 = sadd.s32 %s91, 1
      %p95 = scmp.eq.s32.totalorder %s15, 1
      %p96 = scmp.ne.s32.totalorder %s91, %s93
      %p97 = scmp.eq.s32.totalorder %s15, 0
      %p98 = por %p96, %p97
      %p99 = scmp.ne.s32.totalorder %s91, %s93
      %p100 = scmp.eq.s32.totalorder %s20, 1
      %p101 = por %p99, %p100
      %p102 = scmp.ne.s32.totalorder %s93, %s94
      %p103 = scmp.eq.s32.totalorder %s20, 0
      %p104 = por %p102, %p103
      %p105 = scmp.ne.s32.totalorder %s93, %s94
      %p106 = scmp.eq.s32.totalorder %s21, 1
      %p107 = por %p105, %p106
      %p109 = scmp.ne.s32.totalorder %s94, %s108
      %p110 = scmp.eq.s32.totalorder %s21, 0
      %p111 = por %p109, %p110
      %s112 = ssub.s32 %s15, %s22
      %p113 = scmp.eq.s32.totalorder %s112, 0
      %s115 = sadd.s32 %s114, 1
      %s116 = scalar_select %p113, %s114, %s115
      %p119 = pneg %p113
      %p120 = scmp.eq.s32.totalorder %s15, 1
      %p121 = por %p119, %p120
      %p122 = scmp.ne.s32.totalorder %s114, %s117
      %p123 = scmp.eq.s32.totalorder %s15, 0
      %p124 = por %p122, %p123
      %p125 = scmp.ne.s32.totalorder %s114, %s117
      %p126 = scmp.eq.s32.totalorder %s20, 1
      %p127 = por %p125, %p126
      %p128 = scmp.ne.s32.totalorder %s117, %s118
      %p129 = scmp.eq.s32.totalorder %s20, 0
      %p130 = por %p128, %p129
      %p131 = scmp.ne.s32.totalorder %s117, %s118
      %p132 = scmp.eq.s32.totalorder %s21, 1
      %p133 = por %p131, %p132
      %p135 = scmp.ne.s32.totalorder %s118, %s134
      %p136 = scmp.eq.s32.totalorder %s21, 0
      %p137 = por %p135, %p136
      %p138 = scmp.le.s32.totalorder 1, %s15
      %p139 = scmp.lt.s32.totalorder %s15, 3
      %p140 = pnand %p138, %p139
      %p141 = pneg %p140
      // Predicated region
      $region9: #{tpu_custom_call.1} parent=5 // pred_check
        _
      $region10: #{tpu_custom_call.1} parent=5 // pred_check_branch
        %143 = sbr.rel (%p140) target = $region12
      $region11: #{tpu_custom_call.1} parent=5 // pred_region
        %s144 = ssub.s32 %s15, 1
        // Predicated region
        $region13: #{tpu_custom_call.1} parent=11 // pred_check
          %p145 = pneg %p62
        $region14: #{tpu_custom_call.1} parent=11 // pred_check_branch
          %147 = sbr.rel (%p145) target = $region16
        $region15: #{tpu_custom_call.1} parent=11 // pred_region
          _
        $region16: #{tpu_custom_call.1} parent=11 // pred_fallthru
          _
        // Predicated region
        $region17: #{tpu_custom_call.1} parent=11 // pred_check
          %p148 = pneg %p83
        $region18: #{tpu_custom_call.1} parent=11 // pred_check_branch
          %150 = sbr.rel (%p148) target = $region20
        $region19: #{tpu_custom_call.1} parent=11 // pred_region
          _
        $region20: #{tpu_custom_call.1} parent=11 // pred_fallthru
          _
        // Predicated region
        $region21: #{tpu_custom_call.1} parent=11 // pred_check
          %p151 = pneg %p104
        $region22: #{tpu_custom_call.1} parent=11 // pred_check_branch
          %153 = sbr.rel (%p151) target = $region24
        $region23: #{tpu_custom_call.1} parent=11 // pred_region
          _
        $region24: #{tpu_custom_call.1} parent=11 // pred_fallthru
          _
      $region12: #{tpu_custom_call.1} parent=5 // pred_fallthru
        _
      %p154 = scmp.lt.s32.totalorder %s15, 2
      // Predicated region
      $region25: #{tpu_custom_call.1} parent=5 // pred_check
        %p155 = pneg %p154
      $region26: #{tpu_custom_call.1} parent=5 // pred_check_branch
        %157 = sbr.rel (%p155) target = $region28
      $region27: #{tpu_custom_call.1} parent=5 // pred_region
        // Predicated region
        $region29: #{tpu_custom_call.1} parent=27 // pred_check
          %p158 = pneg %p35
        $region30: #{tpu_custom_call.1} parent=27 // pred_check_branch
          %160 = sbr.rel (%p158) target = $region32
        $region31: #{tpu_custom_call.1} parent=27 // pred_region
          %s161 = sand.u32 %s25, 1
          %s162 = sand.u32 %s25, 1
          %s163 = smul.addr %s162, 16
          %s164 = scalar_lea.vmem [#allocation3], %s163
          %s165 = smul.addr %s15, 4
          %s166 = scalar_lea.vmem %s0, %s165
          // Predicated region
          $region33: #{tpu_custom_call.1} parent=31 // pred_check
            _
          $region34: #{tpu_custom_call.1} parent=31 // pred_check_branch
            %168 = sbr.rel (0) target = $region36
          $region35: #{tpu_custom_call.1} parent=31 // pred_region
            // Predicated region
            $region37: #{tpu_custom_call.1} parent=35 // pred_check
              _
            $region38: #{tpu_custom_call.1} parent=35 // pred_check_branch
              %170 = sbr.rel target = $region40
            $region39: #{tpu_custom_call.1} parent=35 // pred_region
              // Predicated region
              $region52: #{tpu_custom_call.1} parent=39 // pred_check
                _
              $region53: #{tpu_custom_call.1} parent=39 // pred_check_branch
                %191 = sbr.rel (0) target = $region55
              $region54: #{tpu_custom_call.1} parent=39 // pred_region
                loop: start=0, step=1, limit=1
                $region56: #{tpu_custom_call.1} parent=54 // loop_pre_header
                  _
                $region57: #{tpu_custom_call.1} parent=54 // loop_header
                  %s193 = sphi 0, %s197
                  %p194 = scmp.ge.s32.totalorder %s193, 1
                  %s198 = sphi %s166, %s166
                  %s199 = sphi %s164, %s164
                $region58: #{tpu_custom_call.1} parent=54 // loop_header_branch
                  %196 = sbr.rel (%p194) target = $region62
                $region59: #{tpu_custom_call.1} parent=54 // loop_body
                  _
                $region60: #{tpu_custom_call.1} parent=54 // loop_footer
                  %s197 = sadd.s32 1, %s193
                $region61: #{tpu_custom_call.1} parent=54 // loop_footer_branch
                  %192 = sbr.rel target = $region57
                $region62: #{tpu_custom_call.1} parent=54 // loop_exit
                  _
                loop: start=0, step=1, limit=1
                $region63: #{tpu_custom_call.1} parent=54 // loop_pre_header
                  _
                $region64: #{tpu_custom_call.1} parent=54 // loop_header
                  %s202 = sphi 0, %s206
                  %p203 = scmp.ge.s32.totalorder %s202, 1
                  %s207 = sphi %s166, %s166
                  %s208 = sphi %s164, %s164
                $region65: #{tpu_custom_call.1} parent=54 // loop_header_branch
                  %205 = sbr.rel (%p203) target = $region69
                $region66: #{tpu_custom_call.1} parent=54 // loop_body
                  %v209 = vld [vmem:[%s207] sm:$0xf]
                  %210 = vst [vmem:[%s208] sm:$0xf] %v209
                  %v211 = vld [vmem:[%s207 + $0x8] sm:$0xf]
                  %212 = vst [vmem:[%s208 + $0x4] sm:$0xf] %v211
                  %v213 = vld [vmem:[%s207 + $0x10] sm:$0xf]
                  %214 = vst [vmem:[%s208 + $0x8] sm:$0xf] %v213
                  %v215 = vld [vmem:[%s207 + $0x18] sm:$0xf]
                  %216 = vst [vmem:[%s208 + $0xc] sm:$0xf] %v215
                $region67: #{tpu_custom_call.1} parent=54 // loop_footer
                  %s206 = sadd.s32 1, %s202
                $region68: #{tpu_custom_call.1} parent=54 // loop_footer_branch
                  %201 = sbr.rel target = $region64
                $region69: #{tpu_custom_call.1} parent=54 // loop_exit
                  _
              $region55: #{tpu_custom_call.1} parent=39 // pred_fallthru
                _
            $region40: #{tpu_custom_call.1} parent=35 // pred_fallthru
              _
            // Predicated region
            $region41: #{tpu_custom_call.1} parent=35 // pred_check
              _
            $region42: #{tpu_custom_call.1} parent=35 // pred_check_branch
              %172 = sbr.rel (0) target = $region44
            $region43: #{tpu_custom_call.1} parent=35 // pred_region
              loop: start=0, step=1, limit=1
              $region45: #{tpu_custom_call.1} parent=43 // loop_pre_header
                _
              $region46: #{tpu_custom_call.1} parent=43 // loop_header
                %s175 = sphi 0, %s179
                %p176 = scmp.ge.s32.totalorder %s175, 1
                %s180 = sphi %s166, %s166
                %s181 = sphi %s164, %s164
              $region47: #{tpu_custom_call.1} parent=43 // loop_header_branch
                %178 = sbr.rel (%p176) target = $region51
              $region48: #{tpu_custom_call.1} parent=43 // loop_body
                %v182 = vld [vmem:[%s180] sm:$0xf]
                %183 = vst [vmem:[%s181] sm:$0xf] %v182
                %v184 = vld [vmem:[%s180 + $0x8] sm:$0xf]
                %185 = vst [vmem:[%s181 + $0x4] sm:$0xf] %v184
                %v186 = vld [vmem:[%s180 + $0x10] sm:$0xf]
                %187 = vst [vmem:[%s181 + $0x8] sm:$0xf] %v186
                %v188 = vld [vmem:[%s180 + $0x18] sm:$0xf]
                %189 = vst [vmem:[%s181 + $0xc] sm:$0xf] %v188
              $region49: #{tpu_custom_call.1} parent=43 // loop_footer
                %s179 = sadd.s32 1, %s175
              $region50: #{tpu_custom_call.1} parent=43 // loop_footer_branch
                %174 = sbr.rel target = $region46
              $region51: #{tpu_custom_call.1} parent=43 // loop_exit
                _
            $region44: #{tpu_custom_call.1} parent=35 // pred_fallthru
              _
          $region36: #{tpu_custom_call.1} parent=31 // pred_fallthru
            _
          %217 = vnop
        $region32: #{tpu_custom_call.1} parent=27 // pred_fallthru
          _
      $region28: #{tpu_custom_call.1} parent=5 // pred_fallthru
        _
      %p218 = scmp.le.s32.totalorder 1, %s15
      %p219 = scmp.lt.s32.totalorder %s15, 3
      %p220 = pnand %p218, %p219
      %p221 = pneg %p220
      // Predicated region
      $region70: #{tpu_custom_call.1} parent=5 // pred_check
        _
      $region71: #{tpu_custom_call.1} parent=5 // pred_check_branch
        %223 = sbr.rel (%p220) target = $region73
      $region72: #{tpu_custom_call.1} parent=5 // pred_region
        %s224 = ssub.s32 %s15, 1
        %s225 = sand.u32 %s28, 1
        %s226 = sand.u32 %s28, 1
        %s227 = smul.addr %s226, 16
        %s228 = scalar_lea.vmem [#allocation3], %s227
        // Predicated region
        $region74: #{tpu_custom_call.1} parent=72 // pred_check
          %p229 = pneg %p41
        $region75: #{tpu_custom_call.1} parent=72 // pred_check_branch
          %231 = sbr.rel (%p229) target = $region77
        $region76: #{tpu_custom_call.1} parent=72 // pred_region
          _
        $region77: #{tpu_custom_call.1} parent=72 // pred_fallthru
          _
        %s232 = sand.u32 %s28, 1
        %s233 = sand.u32 %s28, 1
        %s234 = smul.addr %s233, 16
        %s235 = scalar_lea.vmem [#allocation3], %s234
        %p236 = pneg %p41
        %p237 = pneg %p38
        %p238 = pneg %p62
        %p239 = pneg %p59
        %p240 = pneg %p83
        %p241 = pneg %p80
        %p242 = pneg %p104
        %p243 = pneg %p101
        %p244 = pneg %p130
        %p245 = pneg %p127
        %s246 = sand.u32 %s117, 1
        %s247 = scalar_lea.sflag [#allocation5], %s246
        %s248 = sand.u32 %s117, 1
        %s249 = scalar_lea.vmem [#allocation4], %s248
        %v251 = vld [vmem:[%s228] sm:$0xf]
        %v252 = vld [vmem:[%s228 + $0x4] sm:$0xf]
        %v253 = vld [vmem:[%s228 + $0x8] sm:$0xf]
        %v254 = vld [vmem:[%s228 + $0xc] sm:$0xf]
        %v255 = vld [vmem:[%s1] sm:$0xf]
        %v256 = vld [vmem:[%s1 + $0x4] sm:$0xf]
        %v257 = vld [vmem:[%s1 + $0x8] sm:$0xf]
        %v258 = vld [vmem:[%s1 + $0xc] sm:$0xf]
        %v259 = vld [vmem:[%s1 + $0x10] sm:$0xf]
        %v260 = vld [vmem:[%s1 + $0x14] sm:$0xf]
        %v261 = vld [vmem:[%s1 + $0x18] sm:$0xf]
        %v262 = vld [vmem:[%s1 + $0x1c] sm:$0xf]
        %v263 = vld [vmem:[%s1 + $0x20] sm:$0xf]
        %v264 = vld [vmem:[%s1 + $0x24] sm:$0xf]
        %v265 = vld [vmem:[%s1 + $0x28] sm:$0xf]
        %v266 = vld [vmem:[%s1 + $0x2c] sm:$0xf]
        %v267 = vld [vmem:[%s1 + $0x30] sm:$0xf]
        %v268 = vld [vmem:[%s1 + $0x34] sm:$0xf]
        %v269 = vld [vmem:[%s1 + $0x38] sm:$0xf]
        %v270 = vld [vmem:[%s1 + $0x3c] sm:$0xf]
        %v271 = vld [vmem:[%s1 + $0x40] sm:$0xf]
        %v272 = vld [vmem:[%s1 + $0x44] sm:$0xf]
        %v273 = vld [vmem:[%s1 + $0x48] sm:$0xf]
        %v274 = vld [vmem:[%s1 + $0x4c] sm:$0xf]
        %v275 = vld [vmem:[%s1 + $0x50] sm:$0xf]
        %v276 = vld [vmem:[%s1 + $0x54] sm:$0xf]
        %v277 = vld [vmem:[%s1 + $0x58] sm:$0xf]
        %v278 = vld [vmem:[%s1 + $0x5c] sm:$0xf]
        %v279 = vld [vmem:[%s1 + $0x60] sm:$0xf]
        %v280 = vld [vmem:[%s1 + $0x64] sm:$0xf]
        %v281 = vld [vmem:[%s1 + $0x68] sm:$0xf]
        %v282 = vld [vmem:[%s1 + $0x6c] sm:$0xf]
        %v283 = vld [vmem:[%s1 + $0x70] sm:$0xf]
        %v284 = vld [vmem:[%s1 + $0x74] sm:$0xf]
        %v285 = vld [vmem:[%s1 + $0x78] sm:$0xf]
        %v286 = vld [vmem:[%s1 + $0x7c] sm:$0xf]
        %v287 = vld [vmem:[%s2] sm:$0xff]
        %v288 = vld [vmem:[%s2 + $0x8] sm:$0xff]
        %v289 = vld [vmem:[%s2 + $0x10] sm:$0xff]
        %v290 = vld [vmem:[%s2 + $0x18] sm:$0xff]
        %v291 = vld [vmem:[%s2 + $0x20] sm:$0xff]
        %v292 = vld [vmem:[%s2 + $0x28] sm:$0xff]
        %v293 = vld [vmem:[%s2 + $0x30] sm:$0xff]
        %v294 = vld [vmem:[%s2 + $0x38] sm:$0xff]
        %v295 = vld [vmem:[%s2 + $0x40] sm:$0xff]
        %v296 = vld [vmem:[%s2 + $0x48] sm:$0xff]
        %v297 = vld [vmem:[%s2 + $0x50] sm:$0xff]
        %v298 = vld [vmem:[%s2 + $0x58] sm:$0xff]
        %v299 = vld [vmem:[%s2 + $0x60] sm:$0xff]
        %v300 = vld [vmem:[%s2 + $0x68] sm:$0xff]
        %v301 = vld [vmem:[%s2 + $0x70] sm:$0xff]
        %v302 = vld [vmem:[%s2 + $0x78] sm:$0xff]
        %v303 = vld [vmem:[%s2 + $0x80] sm:$0xff]
        %v304 = vld [vmem:[%s2 + $0x88] sm:$0xff]
        %v305 = vld [vmem:[%s2 + $0x90] sm:$0xff]
        %v306 = vld [vmem:[%s2 + $0x98] sm:$0xff]
        %v307 = vld [vmem:[%s2 + $0xa0] sm:$0xff]
        %v308 = vld [vmem:[%s2 + $0xa8] sm:$0xff]
        %v309 = vld [vmem:[%s2 + $0xb0] sm:$0xff]
        %v310 = vld [vmem:[%s2 + $0xb8] sm:$0xff]
        %v311 = vld [vmem:[%s2 + $0xc0] sm:$0xff]
        %v312 = vld [vmem:[%s2 + $0xc8] sm:$0xff]
        %v313 = vld [vmem:[%s2 + $0xd0] sm:$0xff]
        %v314 = vld [vmem:[%s2 + $0xd8] sm:$0xff]
        %v315 = vld [vmem:[%s2 + $0xe0] sm:$0xff]
        %v316 = vld [vmem:[%s2 + $0xe8] sm:$0xff]
        %v317 = vld [vmem:[%s2 + $0xf0] sm:$0xff]
        %v318 = vld [vmem:[%s2 + $0xf8] sm:$0xff]
        %v351 = vunpack.c.l.b16 %v255
        %v352 = vunpack.c.l.b16 %v256
        %v353 = vunpack.c.l.b16 %v257
        %v354 = vunpack.c.l.b16 %v258
        %v355 = vunpack.c.l.b16 %v259
        %v356 = vunpack.c.l.b16 %v260
        %v357 = vunpack.c.l.b16 %v261
        %v358 = vunpack.c.l.b16 %v262
        %v359 = vunpack.c.l.b16 %v263
        %v360 = vunpack.c.l.b16 %v264
        %v361 = vunpack.c.l.b16 %v265
        %v362 = vunpack.c.l.b16 %v266
        %v363 = vunpack.c.l.b16 %v267
        %v364 = vunpack.c.l.b16 %v268
        %v365 = vunpack.c.l.b16 %v269
        %v366 = vunpack.c.l.b16 %v270
        %v367 = vunpack.c.l.b16 %v271
        %v368 = vunpack.c.l.b16 %v272
        %v369 = vunpack.c.l.b16 %v273
        %v370 = vunpack.c.l.b16 %v274
        %v371 = vunpack.c.l.b16 %v275
        %v372 = vunpack.c.l.b16 %v276
        %v373 = vunpack.c.l.b16 %v277
        %v374 = vunpack.c.l.b16 %v278
        %v375 = vunpack.c.l.b16 %v279
        %v376 = vunpack.c.l.b16 %v280
        %v377 = vunpack.c.l.b16 %v281
        %v378 = vunpack.c.l.b16 %v282
        %v379 = vunpack.c.l.b16 %v283
        %v380 = vunpack.c.l.b16 %v284
        %v381 = vunpack.c.l.b16 %v285
        %v382 = vunpack.c.l.b16 %v286
        %v383 = vpack.c.b16 %v352, %v351
        %v384 = vpack.c.b16 %v354, %v353
        %v385 = vpack.c.b16 %v356, %v355
        %v386 = vpack.c.b16 %v358, %v357
        %v387 = vpack.c.b16 %v360, %v359
        %v388 = vpack.c.b16 %v362, %v361
        %v389 = vpack.c.b16 %v364, %v363
        %v390 = vpack.c.b16 %v366, %v365
        %v391 = vpack.c.b16 %v368, %v367
        %v392 = vpack.c.b16 %v370, %v369
        %v393 = vpack.c.b16 %v372, %v371
        %v394 = vpack.c.b16 %v374, %v373
        %v395 = vpack.c.b16 %v376, %v375
        %v396 = vpack.c.b16 %v378, %v377
        %v397 = vpack.c.b16 %v380, %v379
        %v398 = vpack.c.b16 %v382, %v381
        %v403 = vunpack.c.l.b16 %v251
        %v404 = vunpack.c.l.b16 %v252
        %v405 = vunpack.c.l.b16 %v253
        %v406 = vunpack.c.l.b16 %v254
        %v407 = vpack.c.b16 %v404, %v403
        %v408 = vpack.c.b16 %v406, %v405
        %vm411 = vcmask 261120
        %v413 = vsel %vm411, %v383, 0
        %v416 = vsel %vm411, %v384, 0
        %v419 = vsel %vm411, %v385, 0
        %v422 = vsel %vm411, %v386, 0
        %v425 = vsel %vm411, %v387, 0
        %v428 = vsel %vm411, %v388, 0
        %v431 = vsel %vm411, %v389, 0
        %v434 = vsel %vm411, %v390, 0
        %v437 = vsel %vm411, %v391, 0
        %v440 = vsel %vm411, %v392, 0
        %v443 = vsel %vm411, %v393, 0
        %v446 = vsel %vm411, %v394, 0
        %v449 = vsel %vm411, %v395, 0
        %v452 = vsel %vm411, %v396, 0
        %v455 = vsel %vm411, %v397, 0
        %v458 = vsel %vm411, %v398, 0
        %460 = vmatprep.subr.bf16.mxu0 0
        %461 = vmatpush1.bf16.msra.mxu0 %v407
        %462 = vmatprep.subr.bf16.mxu0 0
        %463 = vmatpush1.bf16.msra.mxu0 %v408
        %464 = vmatprep.subr.bf16.mxu0 0
        %465 = vmatpush1.bf16.msra.mxu0 0
        %466 = vmatprep.subr.bf16.mxu0 0
        %467 = vmatpush1.bf16.msra.mxu0 0
        %468 = vmatprep.subr.bf16.mxu0 0
        %469 = vmatpush1.bf16.msra.mxu0 0
        %470 = vmatprep.subr.bf16.mxu0 0
        %471 = vmatpush1.bf16.msra.mxu0 0
        %472 = vmatprep.subr.bf16.mxu0 0
        %473 = vmatpush1.bf16.msra.mxu0 0
        %474 = vmatprep.subr.bf16.mxu0 0
        %475 = vmatpush1.bf16.msra.mxu0 0
        %476 = vmatprep.subr.bf16.mxu0 0
        %477 = vmatpush1.bf16.msra.mxu0 0
        %478 = vmatprep.subr.bf16.mxu0 0
        %479 = vmatpush1.bf16.msra.mxu0 0
        %480 = vmatprep.subr.bf16.mxu0 0
        %481 = vmatpush1.bf16.msra.mxu0 0
        %482 = vmatprep.subr.bf16.mxu0 0
        %483 = vmatpush1.bf16.msra.mxu0 0
        %484 = vmatprep.subr.bf16.mxu0 0
        %485 = vmatpush1.bf16.msra.mxu0 0
        %486 = vmatprep.subr.bf16.mxu0 0
        %487 = vmatpush1.bf16.msra.mxu0 0
        %488 = vmatprep.subr.bf16.mxu0 0
        %489 = vmatpush1.bf16.msra.mxu0 0
        %490 = vmatprep.subr.bf16.mxu0 0
        %491 = vmatpush1.bf16.msra.mxu0 0
        %492 = vmatprep.mubr.bf16.mxu0 0
        %493 = vmatmul.mubr.bf16.gmra.mrb[0].mxu0 %v413
        %v494 = vpop.f32.mrb[0].mxu0
        %v495 = vadd.f32 0.0, %v494
        %v496 = vpop.f32.mrb[0].mxu0
        %v497 = vpop.f32.mrb[0].mxu0
        %v498 = vadd.f32 0.0, %v497
        %v499 = vpop.f32.mrb[0].mxu0
        %500 = vmatprep.mubr.bf16.mxu0 0
        %501 = vmatmul.mubr.bf16.gmra.mrb[0].mxu0 %v416
        %v502 = vpop.f32.mrb[0].mxu0
        %v503 = vadd.f32 0.0, %v502
        %v504 = vpop.f32.mrb[0].mxu0
        %v505 = vpop.f32.mrb[0].mxu0
        %v506 = vadd.f32 0.0, %v505
        %v507 = vpop.f32.mrb[0].mxu0
        %508 = vmatprep.mubr.bf16.mxu0 0
        %509 = vmatmul.mubr.bf16.gmra.mrb[0].mxu0 %v419
        %v510 = vpop.f32.mrb[0].mxu0
        %v511 = vadd.f32 0.0, %v510
        %v512 = vpop.f32.mrb[0].mxu0
        %v513 = vpop.f32.mrb[0].mxu0
        %v514 = vadd.f32 0.0, %v513
        %v515 = vpop.f32.mrb[0].mxu0
        %516 = vmatprep.mubr.bf16.mxu0 0
        %517 = vmatmul.mubr.bf16.gmra.mrb[0].mxu0 %v422
        %v518 = vpop.f32.mrb[0].mxu0
        %v519 = vadd.f32 0.0, %v518
        %v520 = vpop.f32.mrb[0].mxu0
        %v521 = vpop.f32.mrb[0].mxu0
        %v522 = vadd.f32 0.0, %v521
        %v523 = vpop.f32.mrb[0].mxu0
        %524 = vmatprep.mubr.bf16.mxu0 0
        %525 = vmatmul.mubr.bf16.gmra.mrb[0].mxu0 %v425
        %v526 = vpop.f32.mrb[0].mxu0
        %v527 = vadd.f32 0.0, %v526
        %v528 = vpop.f32.mrb[0].mxu0
        %v529 = vpop.f32.mrb[0].mxu0
        %v530 = vadd.f32 0.0, %v529
        %v531 = vpop.f32.mrb[0].mxu0
        %532 = vmatprep.mubr.bf16.mxu0 0
        %533 = vmatmul.mubr.bf16.gmra.mrb[0].mxu0 %v428
        %v534 = vpop.f32.mrb[0].mxu0
        %v535 = vadd.f32 0.0, %v534
        %v536 = vpop.f32.mrb[0].mxu0
        %v537 = vpop.f32.mrb[0].mxu0
        %v538 = vadd.f32 0.0, %v537
        %v539 = vpop.f32.mrb[0].mxu0
        %540 = vmatprep.mubr.bf16.mxu0 0
        %541 = vmatmul.mubr.bf16.gmra.mrb[0].mxu0 %v431
        %v542 = vpop.f32.mrb[0].mxu0
        %v543 = vadd.f32 0.0, %v542
        %v544 = vpop.f32.mrb[0].mxu0
        %v545 = vpop.f32.mrb[0].mxu0
        %v546 = vadd.f32 0.0, %v545
        %v547 = vpop.f32.mrb[0].mxu0
        %548 = vmatprep.mubr.bf16.mxu0 0
        %549 = vmatmul.mubr.bf16.gmra.mrb[0].mxu0 %v434
        %v550 = vpop.f32.mrb[0].mxu0
        %v551 = vadd.f32 0.0, %v550
        %v552 = vpop.f32.mrb[0].mxu0
        %v553 = vpop.f32.mrb[0].mxu0
        %v554 = vadd.f32 0.0, %v553
        %v555 = vpop.f32.mrb[0].mxu0
        %556 = vmatprep.mubr.bf16.mxu0 0
        %557 = vmatmul.mubr.bf16.gmra.mrb[0].mxu0 %v437
        %v558 = vpop.f32.mrb[0].mxu0
        %v559 = vadd.f32 0.0, %v558
        %v560 = vpop.f32.mrb[0].mxu0
        %v561 = vpop.f32.mrb[0].mxu0
        %v562 = vadd.f32 0.0, %v561
        %v563 = vpop.f32.mrb[0].mxu0
        %564 = vmatprep.mubr.bf16.mxu0 0
        %565 = vmatmul.mubr.bf16.gmra.mrb[0].mxu0 %v440
        %v566 = vpop.f32.mrb[0].mxu0
        %v567 = vadd.f32 0.0, %v566
        %v568 = vpop.f32.mrb[0].mxu0
        %v569 = vpop.f32.mrb[0].mxu0
        %v570 = vadd.f32 0.0, %v569
        %v571 = vpop.f32.mrb[0].mxu0
        %572 = vmatprep.mubr.bf16.mxu0 0
        %573 = vmatmul.mubr.bf16.gmra.mrb[0].mxu0 %v443
        %v574 = vpop.f32.mrb[0].mxu0
        %v575 = vadd.f32 0.0, %v574
        %v576 = vpop.f32.mrb[0].mxu0
        %v577 = vpop.f32.mrb[0].mxu0
        %v578 = vadd.f32 0.0, %v577
        %v579 = vpop.f32.mrb[0].mxu0
        %580 = vmatprep.mubr.bf16.mxu0 0
        %581 = vmatmul.mubr.bf16.gmra.mrb[0].mxu0 %v446
        %v582 = vpop.f32.mrb[0].mxu0
        %v583 = vadd.f32 0.0, %v582
        %v584 = vpop.f32.mrb[0].mxu0
        %v585 = vpop.f32.mrb[0].mxu0
        %v586 = vadd.f32 0.0, %v585
        %v587 = vpop.f32.mrb[0].mxu0
        %588 = vmatprep.mubr.bf16.mxu0 0
        %589 = vmatmul.mubr.bf16.gmra.mrb[0].mxu0 %v449
        %v590 = vpop.f32.mrb[0].mxu0
        %v591 = vadd.f32 0.0, %v590
        %v592 = vpop.f32.mrb[0].mxu0
        %v593 = vpop.f32.mrb[0].mxu0
        %v594 = vadd.f32 0.0, %v593
        %v595 = vpop.f32.mrb[0].mxu0
        %596 = vmatprep.mubr.bf16.mxu0 0
        %597 = vmatmul.mubr.bf16.gmra.mrb[0].mxu0 %v452
        %v598 = vpop.f32.mrb[0].mxu0
        %v599 = vadd.f32 0.0, %v598
        %v600 = vpop.f32.mrb[0].mxu0
        %v601 = vpop.f32.mrb[0].mxu0
        %v602 = vadd.f32 0.0, %v601
        %v603 = vpop.f32.mrb[0].mxu0
        %604 = vmatprep.mubr.bf16.mxu0 0
        %605 = vmatmul.mubr.bf16.gmra.mrb[0].mxu0 %v455
        %v606 = vpop.f32.mrb[0].mxu0
        %v607 = vadd.f32 0.0, %v606
        %v608 = vpop.f32.mrb[0].mxu0
        %v609 = vpop.f32.mrb[0].mxu0
        %v610 = vadd.f32 0.0, %v609
        %v611 = vpop.f32.mrb[0].mxu0
        %612 = vmatprep.mubr.bf16.mxu0 0
        %613 = vmatmul.mubr.bf16.gmra.mrb[0].mxu0 %v458
        %v614 = vpop.f32.mrb[0].mxu0
        %v615 = vadd.f32 0.0, %v614
        %v616 = vpop.f32.mrb[0].mxu0
        %v617 = vpop.f32.mrb[0].mxu0
        %v618 = vadd.f32 0.0, %v617
        %v619 = vpop.f32.mrb[0].mxu0
        %620 = vdwg.mxu0
        %622 = vset.pattern.permute.xlu0 0
        %623 = vperm.xlu0 %622, %v287
        %v624 = vpop.permute.xlu0 %623
        %627 = vset.pattern.permute.xlu0 0
        %628 = vperm.xlu0 %627, %v288
        %v629 = vpop.permute.xlu0 %628
        %632 = vset.pattern.permute.xlu0 0
        %633 = vperm.xlu0 %632, %v289
        %v634 = vpop.permute.xlu0 %633
        %637 = vset.pattern.permute.xlu0 0
        %638 = vperm.xlu0 %637, %v290
        %v639 = vpop.permute.xlu0 %638
        %642 = vset.pattern.permute.xlu0 0
        %643 = vperm.xlu0 %642, %v291
        %v644 = vpop.permute.xlu0 %643
        %647 = vset.pattern.permute.xlu0 0
        %648 = vperm.xlu0 %647, %v292
        %v649 = vpop.permute.xlu0 %648
        %652 = vset.pattern.permute.xlu0 0
        %653 = vperm.xlu0 %652, %v293
        %v654 = vpop.permute.xlu0 %653
        %657 = vset.pattern.permute.xlu0 0
        %658 = vperm.xlu0 %657, %v294
        %v659 = vpop.permute.xlu0 %658
        %662 = vset.pattern.permute.xlu0 0
        %663 = vperm.xlu0 %662, %v295
        %v664 = vpop.permute.xlu0 %663
        %667 = vset.pattern.permute.xlu0 0
        %668 = vperm.xlu0 %667, %v296
        %v669 = vpop.permute.xlu0 %668
        %672 = vset.pattern.permute.xlu0 0
        %673 = vperm.xlu0 %672, %v297
        %v674 = vpop.permute.xlu0 %673
        %677 = vset.pattern.permute.xlu0 0
        %678 = vperm.xlu0 %677, %v298
        %v679 = vpop.permute.xlu0 %678
        %682 = vset.pattern.permute.xlu0 0
        %683 = vperm.xlu0 %682, %v299
        %v684 = vpop.permute.xlu0 %683
        %687 = vset.pattern.permute.xlu0 0
        %688 = vperm.xlu0 %687, %v300
        %v689 = vpop.permute.xlu0 %688
        %692 = vset.pattern.permute.xlu0 0
        %693 = vperm.xlu0 %692, %v301
        %v694 = vpop.permute.xlu0 %693
        %697 = vset.pattern.permute.xlu0 0
        %698 = vperm.xlu0 %697, %v302
        %v699 = vpop.permute.xlu0 %698
        %702 = vset.pattern.permute.xlu0 0
        %703 = vperm.xlu0 %702, %v303
        %v704 = vpop.permute.xlu0 %703
        %707 = vset.pattern.permute.xlu0 0
        %708 = vperm.xlu0 %707, %v304
        %v709 = vpop.permute.xlu0 %708
        %712 = vset.pattern.permute.xlu0 0
        %713 = vperm.xlu0 %712, %v305
        %v714 = vpop.permute.xlu0 %713
        %717 = vset.pattern.permute.xlu0 0
        %718 = vperm.xlu0 %717, %v306
        %v719 = vpop.permute.xlu0 %718
        %722 = vset.pattern.permute.xlu0 0
        %723 = vperm.xlu0 %722, %v307
        %v724 = vpop.permute.xlu0 %723
        %727 = vset.pattern.permute.xlu0 0
        %728 = vperm.xlu0 %727, %v308
        %v729 = vpop.permute.xlu0 %728
        %732 = vset.pattern.permute.xlu0 0
        %733 = vperm.xlu0 %732, %v309
        %v734 = vpop.permute.xlu0 %733
        %737 = vset.pattern.permute.xlu0 0
        %738 = vperm.xlu0 %737, %v310
        %v739 = vpop.permute.xlu0 %738
        %742 = vset.pattern.permute.xlu0 0
        %743 = vperm.xlu0 %742, %v311
        %v744 = vpop.permute.xlu0 %743
        %747 = vset.pattern.permute.xlu0 0
        %748 = vperm.xlu0 %747, %v312
        %v749 = vpop.permute.xlu0 %748
        %752 = vset.pattern.permute.xlu0 0
        %753 = vperm.xlu0 %752, %v313
        %v754 = vpop.permute.xlu0 %753
        %757 = vset.pattern.permute.xlu0 0
        %758 = vperm.xlu0 %757, %v314
        %v759 = vpop.permute.xlu0 %758
        %762 = vset.pattern.permute.xlu0 0
        %763 = vperm.xlu0 %762, %v315
        %v764 = vpop.permute.xlu0 %763
        %767 = vset.pattern.permute.xlu0 0
        %768 = vperm.xlu0 %767, %v316
        %v769 = vpop.permute.xlu0 %768
        %772 = vset.pattern.permute.xlu0 0
        %773 = vperm.xlu0 %772, %v317
        %v774 = vpop.permute.xlu0 %773
        %777 = vset.pattern.permute.xlu0 0
        %778 = vperm.xlu0 %777, %v318
        %v779 = vpop.permute.xlu0 %778
        %v781 = vmul.f32 %v495, %v624
        %v782 = vmul.f32 %v498, %v629
        %v783 = vmul.f32 %v503, %v634
        %v784 = vmul.f32 %v506, %v639
        %v785 = vmul.f32 %v511, %v644
        %v786 = vmul.f32 %v514, %v649
        %v787 = vmul.f32 %v519, %v654
        %v788 = vmul.f32 %v522, %v659
        %v789 = vmul.f32 %v527, %v664
        %v790 = vmul.f32 %v530, %v669
        %v791 = vmul.f32 %v535, %v674
        %v792 = vmul.f32 %v538, %v679
        %v793 = vmul.f32 %v543, %v684
        %v794 = vmul.f32 %v546, %v689
        %v795 = vmul.f32 %v551, %v694
        %v796 = vmul.f32 %v554, %v699
        %v797 = vmul.f32 %v559, %v704
        %v798 = vmul.f32 %v562, %v709
        %v799 = vmul.f32 %v567, %v714
        %v800 = vmul.f32 %v570, %v719
        %v801 = vmul.f32 %v575, %v724
        %v802 = vmul.f32 %v578, %v729
        %v803 = vmul.f32 %v583, %v734
        %v804 = vmul.f32 %v586, %v739
        %v805 = vmul.f32 %v591, %v744
        %v806 = vmul.f32 %v594, %v749
        %v807 = vmul.f32 %v599, %v754
        %v808 = vmul.f32 %v602, %v759
        %v809 = vmul.f32 %v607, %v764
        %v810 = vmul.f32 %v610, %v769
        %v811 = vmul.f32 %v615, %v774
        %v812 = vmul.f32 %v618, %v779
        %v813 = vadd.f32 %v781, %v782
        %v814 = vadd.f32 %v813, %v783
        %v815 = vadd.f32 %v814, %v784
        %v816 = vadd.f32 %v815, %v785
        %v817 = vadd.f32 %v816, %v786
        %v818 = vadd.f32 %v817, %v787
        %v819 = vadd.f32 %v818, %v788
        %v820 = vadd.f32 %v819, %v789
        %v821 = vadd.f32 %v820, %v790
        %v822 = vadd.f32 %v821, %v791
        %v823 = vadd.f32 %v822, %v792
        %v824 = vadd.f32 %v823, %v793
        %v825 = vadd.f32 %v824, %v794
        %v826 = vadd.f32 %v825, %v795
        %v827 = vadd.f32 %v826, %v796
        %v828 = vadd.f32 %v827, %v797
        %v829 = vadd.f32 %v828, %v798
        %v830 = vadd.f32 %v829, %v799
        %v831 = vadd.f32 %v830, %v800
        %v832 = vadd.f32 %v831, %v801
        %v833 = vadd.f32 %v832, %v802
        %v834 = vadd.f32 %v833, %v803
        %v835 = vadd.f32 %v834, %v804
        %v836 = vadd.f32 %v835, %v805
        %v837 = vadd.f32 %v836, %v806
        %v838 = vadd.f32 %v837, %v807
        %v839 = vadd.f32 %v838, %v808
        %v840 = vadd.f32 %v839, %v809
        %v841 = vadd.f32 %v840, %v810
        %v842 = vadd.f32 %v841, %v811
        %v843 = vadd.f32 %v842, %v812
        %v844 = vrot.slane %v843, 4
        %v845 = vadd.f32 %v843, %v844
        %v846 = vrot.slane %v845, 2
        %v847 = vadd.f32 %v845, %v846
        %v848 = vrot.slane %v847, 1
        %v849 = vadd.f32 %v847, %v848
        %v850 = vadd.f32 %v849, 0.0
        %s851 = scalar_lea.vmem %s1, 128
        %v852 = vld [vmem:[%s851] sm:$0xf]
        %v853 = vld [vmem:[%s851 + $0x4] sm:$0xf]
        %v854 = vld [vmem:[%s851 + $0x8] sm:$0xf]
        %v855 = vld [vmem:[%s851 + $0xc] sm:$0xf]
        %v856 = vld [vmem:[%s851 + $0x10] sm:$0xf]
        %v857 = vld [vmem:[%s851 + $0x14] sm:$0xf]
        %v858 = vld [vmem:[%s851 + $0x18] sm:$0xf]
        %v859 = vld [vmem:[%s851 + $0x1c] sm:$0xf]
        %v860 = vld [vmem:[%s851 + $0x20] sm:$0xf]
        %v861 = vld [vmem:[%s851 + $0x24] sm:$0xf]
        %v862 = vld [vmem:[%s851 + $0x28] sm:$0xf]
        %v863 = vld [vmem:[%s851 + $0x2c] sm:$0xf]
        %v864 = vld [vmem:[%s851 + $0x30] sm:$0xf]
        %v865 = vld [vmem:[%s851 + $0x34] sm:$0xf]
        %v866 = vld [vmem:[%s851 + $0x38] sm:$0xf]
        %v867 = vld [vmem:[%s851 + $0x3c] sm:$0xf]
        %v868 = vld [vmem:[%s851 + $0x40] sm:$0xf]
        %v869 = vld [vmem:[%s851 + $0x44] sm:$0xf]
        %v870 = vld [vmem:[%s851 + $0x48] sm:$0xf]
        %v871 = vld [vmem:[%s851 + $0x4c] sm:$0xf]
        %v872 = vld [vmem:[%s851 + $0x50] sm:$0xf]
        %v873 = vld [vmem:[%s851 + $0x54] sm:$0xf]
        %v874 = vld [vmem:[%s851 + $0x58] sm:$0xf]
        %v875 = vld [vmem:[%s851 + $0x5c] sm:$0xf]
        %v876 = vld [vmem:[%s851 + $0x60] sm:$0xf]
        %v877 = vld [vmem:[%s851 + $0x64] sm:$0xf]
        %v878 = vld [vmem:[%s851 + $0x68] sm:$0xf]
        %v879 = vld [vmem:[%s851 + $0x6c] sm:$0xf]
        %v880 = vld [vmem:[%s851 + $0x70] sm:$0xf]
        %v881 = vld [vmem:[%s851 + $0x74] sm:$0xf]
        %v882 = vld [vmem:[%s851 + $0x78] sm:$0xf]
        %v883 = vld [vmem:[%s851 + $0x7c] sm:$0xf]
        %s884 = scalar_lea.vmem %s2, 256
        %v885 = vld [vmem:[%s884] sm:$0xff]
        %v886 = vld [vmem:[%s884 + $0x8] sm:$0xff]
        %v887 = vld [vmem:[%s884 + $0x10] sm:$0xff]
        %v888 = vld [vmem:[%s884 + $0x18] sm:$0xff]
        %v889 = vld [vmem:[%s884 + $0x20] sm:$0xff]
        %v890 = vld [vmem:[%s884 + $0x28] sm:$0xff]
        %v891 = vld [vmem:[%s884 + $0x30] sm:$0xff]
        %v892 = vld [vmem:[%s884 + $0x38] sm:$0xff]
        %v893 = vld [vmem:[%s884 + $0x40] sm:$0xff]
        %v894 = vld [vmem:[%s884 + $0x48] sm:$0xff]
        %v895 = vld [vmem:[%s884 + $0x50] sm:$0xff]
        %v896 = vld [vmem:[%s884 + $0x58] sm:$0xff]
        %v897 = vld [vmem:[%s884 + $0x60] sm:$0xff]
        %v898 = vld [vmem:[%s884 + $0x68] sm:$0xff]
        %v899 = vld [vmem:[%s884 + $0x70] sm:$0xff]
        %v900 = vld [vmem:[%s884 + $0x78] sm:$0xff]
        %v901 = vld [vmem:[%s884 + $0x80] sm:$0xff]
        %v902 = vld [vmem:[%s884 + $0x88] sm:$0xff]
        %v903 = vld [vmem:[%s884 + $0x90] sm:$0xff]
        %v904 = vld [vmem:[%s884 + $0x98] sm:$0xff]
        %v905 = vld [vmem:[%s884 + $0xa0] sm:$0xff]
        %v906 = vld [vmem:[%s884 + $0xa8] sm:$0xff]
        %v907 = vld [vmem:[%s884 + $0xb0] sm:$0xff]
        %v908 = vld [vmem:[%s884 + $0xb8] sm:$0xff]
        %v909 = vld [vmem:[%s884 + $0xc0] sm:$0xff]
        %v910 = vld [vmem:[%s884 + $0xc8] sm:$0xff]
        %v911 = vld [vmem:[%s884 + $0xd0] sm:$0xff]
        %v912 = vld [vmem:[%s884 + $0xd8] sm:$0xff]
        %v913 = vld [vmem:[%s884 + $0xe0] sm:$0xff]
        %v914 = vld [vmem:[%s884 + $0xe8] sm:$0xff]
        %v915 = vld [vmem:[%s884 + $0xf0] sm:$0xff]
        %v916 = vld [vmem:[%s884 + $0xf8] sm:$0xff]
        %v949 = vunpack.c.l.b16 %v852
        %v950 = vunpack.c.l.b16 %v853
        %v951 = vunpack.c.l.b16 %v854
        %v952 = vunpack.c.l.b16 %v855
        %v953 = vunpack.c.l.b16 %v856
        %v954 = vunpack.c.l.b16 %v857
        %v955 = vunpack.c.l.b16 %v858
        %v956 = vunpack.c.l.b16 %v859
        %v957 = vunpack.c.l.b16 %v860
        %v958 = vunpack.c.l.b16 %v861
        %v959 = vunpack.c.l.b16 %v862
        %v960 = vunpack.c.l.b16 %v863
        %v961 = vunpack.c.l.b16 %v864
        %v962 = vunpack.c.l.b16 %v865
        %v963 = vunpack.c.l.b16 %v866
        %v964 = vunpack.c.l.b16 %v867
        %v965 = vunpack.c.l.b16 %v868
        %v966 = vunpack.c.l.b16 %v869
        %v967 = vunpack.c.l.b16 %v870
        %v968 = vunpack.c.l.b16 %v871
        %v969 = vunpack.c.l.b16 %v872
        %v970 = vunpack.c.l.b16 %v873
        %v971 = vunpack.c.l.b16 %v874
        %v972 = vunpack.c.l.b16 %v875
        %v973 = vunpack.c.l.b16 %v876
        %v974 = vunpack.c.l.b16 %v877
        %v975 = vunpack.c.l.b16 %v878
        %v976 = vunpack.c.l.b16 %v879
        %v977 = vunpack.c.l.b16 %v880
        %v978 = vunpack.c.l.b16 %v881
        %v979 = vunpack.c.l.b16 %v882
        %v980 = vunpack.c.l.b16 %v883
        %v981 = vpack.c.b16 %v950, %v949
        %v982 = vpack.c.b16 %v952, %v951
        %v983 = vpack.c.b16 %v954, %v953
        %v984 = vpack.c.b16 %v956, %v955
        %v985 = vpack.c.b16 %v958, %v957
        %v986 = vpack.c.b16 %v960, %v959
        %v987 = vpack.c.b16 %v962, %v961
        %v988 = vpack.c.b16 %v964, %v963
        %v989 = vpack.c.b16 %v966, %v965
        %v990 = vpack.c.b16 %v968, %v967
        %v991 = vpack.c.b16 %v970, %v969
        %v992 = vpack.c.b16 %v972, %v971
        %v993 = vpack.c.b16 %v974, %v973
        %v994 = vpack.c.b16 %v976, %v975
        %v995 = vpack.c.b16 %v978, %v977
        %v996 = vpack.c.b16 %v980, %v979
        %v998 = vsel %vm411, %v981, 0
        %v1001 = vsel %vm411, %v982, 0
        %v1004 = vsel %vm411, %v983, 0
        %v1007 = vsel %vm411, %v984, 0
        %v1010 = vsel %vm411, %v985, 0
        %v1013 = vsel %vm411, %v986, 0
        %v1016 = vsel %vm411, %v987, 0
        %v1019 = vsel %vm411, %v988, 0
        %v1022 = vsel %vm411, %v989, 0
        %v1025 = vsel %vm411, %v990, 0
        %v1028 = vsel %vm411, %v991, 0
        %v1031 = vsel %vm411, %v992, 0
        %v1034 = vsel %vm411, %v993, 0
        %v1037 = vsel %vm411, %v994, 0
        %v1040 = vsel %vm411, %v995, 0
        %v1043 = vsel %vm411, %v996, 0
        %1045 = vmatprep.subr.bf16.mxu0 0
        %1046 = vmatpush1.bf16.msra.mxu0 %v407
        %1047 = vmatprep.subr.bf16.mxu0 0
        %1048 = vmatpush1.bf16.msra.mxu0 %v408
        %1049 = vmatprep.subr.bf16.mxu0 0
        %1050 = vmatpush1.bf16.msra.mxu0 0
        %1051 = vmatprep.subr.bf16.mxu0 0
        %1052 = vmatpush1.bf16.msra.mxu0 0
        %1053 = vmatprep.subr.bf16.mxu0 0
        %1054 = vmatpush1.bf16.msra.mxu0 0
        %1055 = vmatprep.subr.bf16.mxu0 0
        %1056 = vmatpush1.bf16.msra.mxu0 0
        %1057 = vmatprep.subr.bf16.mxu0 0
        %1058 = vmatpush1.bf16.msra.mxu0 0
        %1059 = vmatprep.subr.bf16.mxu0 0
        %1060 = vmatpush1.bf16.msra.mxu0 0
        %1061 = vmatprep.subr.bf16.mxu0 0
        %1062 = vmatpush1.bf16.msra.mxu0 0
        %1063 = vmatprep.subr.bf16.mxu0 0
        %1064 = vmatpush1.bf16.msra.mxu0 0
        %1065 = vmatprep.subr.bf16.mxu0 0
        %1066 = vmatpush1.bf16.msra.mxu0 0
        %1067 = vmatprep.subr.bf16.mxu0 0
        %1068 = vmatpush1.bf16.msra.mxu0 0
        %1069 = vmatprep.subr.bf16.mxu0 0
        %1070 = vmatpush1.bf16.msra.mxu0 0
        %1071 = vmatprep.subr.bf16.mxu0 0
        %1072 = vmatpush1.bf16.msra.mxu0 0
        %1073 = vmatprep.subr.bf16.mxu0 0
        %1074 = vmatpush1.bf16.msra.mxu0 0
        %1075 = vmatprep.subr.bf16.mxu0 0
        %1076 = vmatpush1.bf16.msra.mxu0 0
        %1077 = vmatprep.mubr.bf16.mxu0 0
        %1078 = vmatmul.mubr.bf16.gmra.mrb[0].mxu0 %v998
        %v1079 = vpop.f32.mrb[0].mxu0
        %v1080 = vadd.f32 0.0, %v1079
        %v1081 = vpop.f32.mrb[0].mxu0
        %v1082 = vpop.f32.mrb[0].mxu0
        %v1083 = vadd.f32 0.0, %v1082
        %v1084 = vpop.f32.mrb[0].mxu0
        %1085 = vmatprep.mubr.bf16.mxu0 0
        %1086 = vmatmul.mubr.bf16.gmra.mrb[0].mxu0 %v1001
        %v1087 = vpop.f32.mrb[0].mxu0
        %v1088 = vadd.f32 0.0, %v1087
        %v1089 = vpop.f32.mrb[0].mxu0
        %v1090 = vpop.f32.mrb[0].mxu0
        %v1091 = vadd.f32 0.0, %v1090
        %v1092 = vpop.f32.mrb[0].mxu0
        %1093 = vmatprep.mubr.bf16.mxu0 0
        %1094 = vmatmul.mubr.bf16.gmra.mrb[0].mxu0 %v1004
        %v1095 = vpop.f32.mrb[0].mxu0
        %v1096 = vadd.f32 0.0, %v1095
        %v1097 = vpop.f32.mrb[0].mxu0
        %v1098 = vpop.f32.mrb[0].mxu0
        %v1099 = vadd.f32 0.0, %v1098
        %v1100 = vpop.f32.mrb[0].mxu0
        %1101 = vmatprep.mubr.bf16.mxu0 0
        %1102 = vmatmul.mubr.bf16.gmra.mrb[0].mxu0 %v1007
        %v1103 = vpop.f32.mrb[0].mxu0
        %v1104 = vadd.f32 0.0, %v1103
        %v1105 = vpop.f32.mrb[0].mxu0
        %v1106 = vpop.f32.mrb[0].mxu0
        %v1107 = vadd.f32 0.0, %v1106
        %v1108 = vpop.f32.mrb[0].mxu0
        %1109 = vmatprep.mubr.bf16.mxu0 0
        %1110 = vmatmul.mubr.bf16.gmra.mrb[0].mxu0 %v1010
        %v1111 = vpop.f32.mrb[0].mxu0
        %v1112 = vadd.f32 0.0, %v1111
        %v1113 = vpop.f32.mrb[0].mxu0
        %v1114 = vpop.f32.mrb[0].mxu0
        %v1115 = vadd.f32 0.0, %v1114
        %v1116 = vpop.f32.mrb[0].mxu0
        %1117 = vmatprep.mubr.bf16.mxu0 0
        %1118 = vmatmul.mubr.bf16.gmra.mrb[0].mxu0 %v1013
        %v1119 = vpop.f32.mrb[0].mxu0
        %v1120 = vadd.f32 0.0, %v1119
        %v1121 = vpop.f32.mrb[0].mxu0
        %v1122 = vpop.f32.mrb[0].mxu0
        %v1123 = vadd.f32 0.0, %v1122
        %v1124 = vpop.f32.mrb[0].mxu0
        %1125 = vmatprep.mubr.bf16.mxu0 0
        %1126 = vmatmul.mubr.bf16.gmra.mrb[0].mxu0 %v1016
        %v1127 = vpop.f32.mrb[0].mxu0
        %v1128 = vadd.f32 0.0, %v1127
        %v1129 = vpop.f32.mrb[0].mxu0
        %v1130 = vpop.f32.mrb[0].mxu0
        %v1131 = vadd.f32 0.0, %v1130
        %v1132 = vpop.f32.mrb[0].mxu0
        %1133 = vmatprep.mubr.bf16.mxu0 0
        %1134 = vmatmul.mubr.bf16.gmra.mrb[0].mxu0 %v1019
        %v1135 = vpop.f32.mrb[0].mxu0
        %v1136 = vadd.f32 0.0, %v1135
        %v1137 = vpop.f32.mrb[0].mxu0
        %v1138 = vpop.f32.mrb[0].mxu0
        %v1139 = vadd.f32 0.0, %v1138
        %v1140 = vpop.f32.mrb[0].mxu0
        %1141 = vmatprep.mubr.bf16.mxu0 0
        %1142 = vmatmul.mubr.bf16.gmra.mrb[0].mxu0 %v1022
        %v1143 = vpop.f32.mrb[0].mxu0
        %v1144 = vadd.f32 0.0, %v1143
        %v1145 = vpop.f32.mrb[0].mxu0
        %v1146 = vpop.f32.mrb[0].mxu0
        %v1147 = vadd.f32 0.0, %v1146
        %v1148 = vpop.f32.mrb[0].mxu0
        %1149 = vmatprep.mubr.bf16.mxu0 0
        %1150 = vmatmul.mubr.bf16.gmra.mrb[0].mxu0 %v1025
        %v1151 = vpop.f32.mrb[0].mxu0
        %v1152 = vadd.f32 0.0, %v1151
        %v1153 = vpop.f32.mrb[0].mxu0
        %v1154 = vpop.f32.mrb[0].mxu0
        %v1155 = vadd.f32 0.0, %v1154
        %v1156 = vpop.f32.mrb[0].mxu0
        %1157 = vmatprep.mubr.bf16.mxu0 0
        %1158 = vmatmul.mubr.bf16.gmra.mrb[0].mxu0 %v1028
        %v1159 = vpop.f32.mrb[0].mxu0
        %v1160 = vadd.f32 0.0, %v1159
        %v1161 = vpop.f32.mrb[0].mxu0
        %v1162 = vpop.f32.mrb[0].mxu0
        %v1163 = vadd.f32 0.0, %v1162
        %v1164 = vpop.f32.mrb[0].mxu0
        %1165 = vmatprep.mubr.bf16.mxu0 0
        %1166 = vmatmul.mubr.bf16.gmra.mrb[0].mxu0 %v1031
        %v1167 = vpop.f32.mrb[0].mxu0
        %v1168 = vadd.f32 0.0, %v1167
        %v1169 = vpop.f32.mrb[0].mxu0
        %v1170 = vpop.f32.mrb[0].mxu0
        %v1171 = vadd.f32 0.0, %v1170
        %v1172 = vpop.f32.mrb[0].mxu0
        %1173 = vmatprep.mubr.bf16.mxu0 0
        %1174 = vmatmul.mubr.bf16.gmra.mrb[0].mxu0 %v1034
        %v1175 = vpop.f32.mrb[0].mxu0
        %v1176 = vadd.f32 0.0, %v1175
        %v1177 = vpop.f32.mrb[0].mxu0
        %v1178 = vpop.f32.mrb[0].mxu0
        %v1179 = vadd.f32 0.0, %v1178
        %v1180 = vpop.f32.mrb[0].mxu0
        %1181 = vmatprep.mubr.bf16.mxu0 0
        %1182 = vmatmul.mubr.bf16.gmra.mrb[0].mxu0 %v1037
        %v1183 = vpop.f32.mrb[0].mxu0
        %v1184 = vadd.f32 0.0, %v1183
        %v1185 = vpop.f32.mrb[0].mxu0
        %v1186 = vpop.f32.mrb[0].mxu0
        %v1187 = vadd.f32 0.0, %v1186
        %v1188 = vpop.f32.mrb[0].mxu0
        %1189 = vmatprep.mubr.bf16.mxu0 0
        %1190 = vmatmul.mubr.bf16.gmra.mrb[0].mxu0 %v1040
        %v1191 = vpop.f32.mrb[0].mxu0
        %v1192 = vadd.f32 0.0, %v1191
        %v1193 = vpop.f32.mrb[0].mxu0
        %v1194 = vpop.f32.mrb[0].mxu0
        %v1195 = vadd.f32 0.0, %v1194
        %v1196 = vpop.f32.mrb[0].mxu0
        %1197 = vmatprep.mubr.bf16.mxu0 0
        %1198 = vmatmul.mubr.bf16.gmra.mrb[0].mxu0 %v1043
        %v1199 = vpop.f32.mrb[0].mxu0
        %v1200 = vadd.f32 0.0, %v1199
        %v1201 = vpop.f32.mrb[0].mxu0
        %v1202 = vpop.f32.mrb[0].mxu0
        %v1203 = vadd.f32 0.0, %v1202
        %v1204 = vpop.f32.mrb[0].mxu0
        %1205 = vdwg.mxu0
        %1207 = vset.pattern.permute.xlu0 0
        %1208 = vperm.xlu0 %1207, %v885
        %v1209 = vpop.permute.xlu0 %1208
        %1212 = vset.pattern.permute.xlu0 0
        %1213 = vperm.xlu0 %1212, %v886
        %v1214 = vpop.permute.xlu0 %1213
        %1217 = vset.pattern.permute.xlu0 0
        %1218 = vperm.xlu0 %1217, %v887
        %v1219 = vpop.permute.xlu0 %1218
        %1222 = vset.pattern.permute.xlu0 0
        %1223 = vperm.xlu0 %1222, %v888
        %v1224 = vpop.permute.xlu0 %1223
        %1227 = vset.pattern.permute.xlu0 0
        %1228 = vperm.xlu0 %1227, %v889
        %v1229 = vpop.permute.xlu0 %1228
        %1232 = vset.pattern.permute.xlu0 0
        %1233 = vperm.xlu0 %1232, %v890
        %v1234 = vpop.permute.xlu0 %1233
        %1237 = vset.pattern.permute.xlu0 0
        %1238 = vperm.xlu0 %1237, %v891
        %v1239 = vpop.permute.xlu0 %1238
        %1242 = vset.pattern.permute.xlu0 0
        %1243 = vperm.xlu0 %1242, %v892
        %v1244 = vpop.permute.xlu0 %1243
        %1247 = vset.pattern.permute.xlu0 0
        %1248 = vperm.xlu0 %1247, %v893
        %v1249 = vpop.permute.xlu0 %1248
        %1252 = vset.pattern.permute.xlu0 0
        %1253 = vperm.xlu0 %1252, %v894
        %v1254 = vpop.permute.xlu0 %1253
        %1257 = vset.pattern.permute.xlu0 0
        %1258 = vperm.xlu0 %1257, %v895
        %v1259 = vpop.permute.xlu0 %1258
        %1262 = vset.pattern.permute.xlu0 0
        %1263 = vperm.xlu0 %1262, %v896
        %v1264 = vpop.permute.xlu0 %1263
        %1267 = vset.pattern.permute.xlu0 0
        %1268 = vperm.xlu0 %1267, %v897
        %v1269 = vpop.permute.xlu0 %1268
        %1272 = vset.pattern.permute.xlu0 0
        %1273 = vperm.xlu0 %1272, %v898
        %v1274 = vpop.permute.xlu0 %1273
        %1277 = vset.pattern.permute.xlu0 0
        %1278 = vperm.xlu0 %1277, %v899
        %v1279 = vpop.permute.xlu0 %1278
        %1282 = vset.pattern.permute.xlu0 0
        %1283 = vperm.xlu0 %1282, %v900
        %v1284 = vpop.permute.xlu0 %1283
        %1287 = vset.pattern.permute.xlu0 0
        %1288 = vperm.xlu0 %1287, %v901
        %v1289 = vpop.permute.xlu0 %1288
        %1292 = vset.pattern.permute.xlu0 0
        %1293 = vperm.xlu0 %1292, %v902
        %v1294 = vpop.permute.xlu0 %1293
        %1297 = vset.pattern.permute.xlu0 0
        %1298 = vperm.xlu0 %1297, %v903
        %v1299 = vpop.permute.xlu0 %1298
        %1302 = vset.pattern.permute.xlu0 0
        %1303 = vperm.xlu0 %1302, %v904
        %v1304 = vpop.permute.xlu0 %1303
        %1307 = vset.pattern.permute.xlu0 0
        %1308 = vperm.xlu0 %1307, %v905
        %v1309 = vpop.permute.xlu0 %1308
        %1312 = vset.pattern.permute.xlu0 0
        %1313 = vperm.xlu0 %1312, %v906
        %v1314 = vpop.permute.xlu0 %1313
        %1317 = vset.pattern.permute.xlu0 0
        %1318 = vperm.xlu0 %1317, %v907
        %v1319 = vpop.permute.xlu0 %1318
        %1322 = vset.pattern.permute.xlu0 0
        %1323 = vperm.xlu0 %1322, %v908
        %v1324 = vpop.permute.xlu0 %1323
        %1327 = vset.pattern.permute.xlu0 0
        %1328 = vperm.xlu0 %1327, %v909
        %v1329 = vpop.permute.xlu0 %1328
        %1332 = vset.pattern.permute.xlu0 0
        %1333 = vperm.xlu0 %1332, %v910
        %v1334 = vpop.permute.xlu0 %1333
        %1337 = vset.pattern.permute.xlu0 0
        %1338 = vperm.xlu0 %1337, %v911
        %v1339 = vpop.permute.xlu0 %1338
        %1342 = vset.pattern.permute.xlu0 0
        %1343 = vperm.xlu0 %1342, %v912
        %v1344 = vpop.permute.xlu0 %1343
        %1347 = vset.pattern.permute.xlu0 0
        %1348 = vperm.xlu0 %1347, %v913
        %v1349 = vpop.permute.xlu0 %1348
        %1352 = vset.pattern.permute.xlu0 0
        %1353 = vperm.xlu0 %1352, %v914
        %v1354 = vpop.permute.xlu0 %1353
        %1357 = vset.pattern.permute.xlu0 0
        %1358 = vperm.xlu0 %1357, %v915
        %v1359 = vpop.permute.xlu0 %1358
        %1362 = vset.pattern.permute.xlu0 0
        %1363 = vperm.xlu0 %1362, %v916
        %v1364 = vpop.permute.xlu0 %1363
        %v1366 = vmul.f32 %v1080, %v1209
        %v1367 = vmul.f32 %v1083, %v1214
        %v1368 = vmul.f32 %v1088, %v1219
        %v1369 = vmul.f32 %v1091, %v1224
        %v1370 = vmul.f32 %v1096, %v1229
        %v1371 = vmul.f32 %v1099, %v1234
        %v1372 = vmul.f32 %v1104, %v1239
        %v1373 = vmul.f32 %v1107, %v1244
        %v1374 = vmul.f32 %v1112, %v1249
        %v1375 = vmul.f32 %v1115, %v1254
        %v1376 = vmul.f32 %v1120, %v1259
        %v1377 = vmul.f32 %v1123, %v1264
        %v1378 = vmul.f32 %v1128, %v1269
        %v1379 = vmul.f32 %v1131, %v1274
        %v1380 = vmul.f32 %v1136, %v1279
        %v1381 = vmul.f32 %v1139, %v1284
        %v1382 = vmul.f32 %v1144, %v1289
        %v1383 = vmul.f32 %v1147, %v1294
        %v1384 = vmul.f32 %v1152, %v1299
        %v1385 = vmul.f32 %v1155, %v1304
        %v1386 = vmul.f32 %v1160, %v1309
        %v1387 = vmul.f32 %v1163, %v1314
        %v1388 = vmul.f32 %v1168, %v1319
        %v1389 = vmul.f32 %v1171, %v1324
        %v1390 = vmul.f32 %v1176, %v1329
        %v1391 = vmul.f32 %v1179, %v1334
        %v1392 = vmul.f32 %v1184, %v1339
        %v1393 = vmul.f32 %v1187, %v1344
        %v1394 = vmul.f32 %v1192, %v1349
        %v1395 = vmul.f32 %v1195, %v1354
        %v1396 = vmul.f32 %v1200, %v1359
        %v1397 = vmul.f32 %v1203, %v1364
        %v1398 = vadd.f32 %v1366, %v1367
        %v1399 = vadd.f32 %v1398, %v1368
        %v1400 = vadd.f32 %v1399, %v1369
        %v1401 = vadd.f32 %v1400, %v1370
        %v1402 = vadd.f32 %v1401, %v1371
        %v1403 = vadd.f32 %v1402, %v1372
        %v1404 = vadd.f32 %v1403, %v1373
        %v1405 = vadd.f32 %v1404, %v1374
        %v1406 = vadd.f32 %v1405, %v1375
        %v1407 = vadd.f32 %v1406, %v1376
        %v1408 = vadd.f32 %v1407, %v1377
        %v1409 = vadd.f32 %v1408, %v1378
        %v1410 = vadd.f32 %v1409, %v1379
        %v1411 = vadd.f32 %v1410, %v1380
        %v1412 = vadd.f32 %v1411, %v1381
        %v1413 = vadd.f32 %v1412, %v1382
        %v1414 = vadd.f32 %v1413, %v1383
        %v1415 = vadd.f32 %v1414, %v1384
        %v1416 = vadd.f32 %v1415, %v1385
        %v1417 = vadd.f32 %v1416, %v1386
        %v1418 = vadd.f32 %v1417, %v1387
        %v1419 = vadd.f32 %v1418, %v1388
        %v1420 = vadd.f32 %v1419, %v1389
        %v1421 = vadd.f32 %v1420, %v1390
        %v1422 = vadd.f32 %v1421, %v1391
        %v1423 = vadd.f32 %v1422, %v1392
        %v1424 = vadd.f32 %v1423, %v1393
        %v1425 = vadd.f32 %v1424, %v1394
        %v1426 = vadd.f32 %v1425, %v1395
        %v1427 = vadd.f32 %v1426, %v1396
        %v1428 = vadd.f32 %v1427, %v1397
        %v1429 = vrot.slane %v1428, 4
        %v1430 = vadd.f32 %v1428, %v1429
        %v1431 = vrot.slane %v1430, 2
        %v1432 = vadd.f32 %v1430, %v1431
        %v1433 = vrot.slane %v1432, 1
        %v1434 = vadd.f32 %v1432, %v1433
        %v1435 = vadd.f32 %v850, %v1434
        %s1436 = scalar_lea.vmem %s1, 256
        %v1437 = vld [vmem:[%s1436] sm:$0xf]
        %v1438 = vld [vmem:[%s1436 + $0x4] sm:$0xf]
        %v1439 = vld [vmem:[%s1436 + $0x8] sm:$0xf]
        %v1440 = vld [vmem:[%s1436 + $0xc] sm:$0xf]
        %v1441 = vld [vmem:[%s1436 + $0x10] sm:$0xf]
        %v1442 = vld [vmem:[%s1436 + $0x14] sm:$0xf]
        %v1443 = vld [vmem:[%s1436 + $0x18] sm:$0xf]
        %v1444 = vld [vmem:[%s1436 + $0x1c] sm:$0xf]
        %v1445 = vld [vmem:[%s1436 + $0x20] sm:$0xf]
        %v1446 = vld [vmem:[%s1436 + $0x24] sm:$0xf]
        %v1447 = vld [vmem:[%s1436 + $0x28] sm:$0xf]
        %v1448 = vld [vmem:[%s1436 + $0x2c] sm:$0xf]
        %v1449 = vld [vmem:[%s1436 + $0x30] sm:$0xf]
        %v1450 = vld [vmem:[%s1436 + $0x34] sm:$0xf]
        %v1451 = vld [vmem:[%s1436 + $0x38] sm:$0xf]
        %v1452 = vld [vmem:[%s1436 + $0x3c] sm:$0xf]
        %v1453 = vld [vmem:[%s1436 + $0x40] sm:$0xf]
        %v1454 = vld [vmem:[%s1436 + $0x44] sm:$0xf]
        %v1455 = vld [vmem:[%s1436 + $0x48] sm:$0xf]
        %v1456 = vld [vmem:[%s1436 + $0x4c] sm:$0xf]
        %v1457 = vld [vmem:[%s1436 + $0x50] sm:$0xf]
        %v1458 = vld [vmem:[%s1436 + $0x54] sm:$0xf]
        %v1459 = vld [vmem:[%s1436 + $0x58] sm:$0xf]
        %v1460 = vld [vmem:[%s1436 + $0x5c] sm:$0xf]
        %v1461 = vld [vmem:[%s1436 + $0x60] sm:$0xf]
        %v1462 = vld [vmem:[%s1436 + $0x64] sm:$0xf]
        %v1463 = vld [vmem:[%s1436 + $0x68] sm:$0xf]
        %v1464 = vld [vmem:[%s1436 + $0x6c] sm:$0xf]
        %v1465 = vld [vmem:[%s1436 + $0x70] sm:$0xf]
        %v1466 = vld [vmem:[%s1436 + $0x74] sm:$0xf]
        %v1467 = vld [vmem:[%s1436 + $0x78] sm:$0xf]
        %v1468 = vld [vmem:[%s1436 + $0x7c] sm:$0xf]
        %s1469 = scalar_lea.vmem %s2, 512
        %v1470 = vld [vmem:[%s1469] sm:$0xff]
        %v1471 = vld [vmem:[%s1469 + $0x8] sm:$0xff]
        %v1472 = vld [vmem:[%s1469 + $0x10] sm:$0xff]
        %v1473 = vld [vmem:[%s1469 + $0x18] sm:$0xff]
        %v1474 = vld [vmem:[%s1469 + $0x20] sm:$0xff]
        %v1475 = vld [vmem:[%s1469 + $0x28] sm:$0xff]
        %v1476 = vld [vmem:[%s1469 + $0x30] sm:$0xff]
        %v1477 = vld [vmem:[%s1469 + $0x38] sm:$0xff]
        %v1478 = vld [vmem:[%s1469 + $0x40] sm:$0xff]
        %v1479 = vld [vmem:[%s1469 + $0x48] sm:$0xff]
        %v1480 = vld [vmem:[%s1469 + $0x50] sm:$0xff]
        %v1481 = vld [vmem:[%s1469 + $0x58] sm:$0xff]
        %v1482 = vld [vmem:[%s1469 + $0x60] sm:$0xff]
        %v1483 = vld [vmem:[%s1469 + $0x68] sm:$0xff]
        %v1484 = vld [vmem:[%s1469 + $0x70] sm:$0xff]
        %v1485 = vld [vmem:[%s1469 + $0x78] sm:$0xff]
        %v1486 = vld [vmem:[%s1469 + $0x80] sm:$0xff]
        %v1487 = vld [vmem:[%s1469 + $0x88] sm:$0xff]
        %v1488 = vld [vmem:[%s1469 + $0x90] sm:$0xff]
        %v1489 = vld [vmem:[%s1469 + $0x98] sm:$0xff]
        %v1490 = vld [vmem:[%s1469 + $0xa0] sm:$0xff]
        %v1491 = vld [vmem:[%s1469 + $0xa8] sm:$0xff]
        %v1492 = vld [vmem:[%s1469 + $0xb0] sm:$0xff]
        %v1493 = vld [vmem:[%s1469 + $0xb8] sm:$0xff]
        %v1494 = vld [vmem:[%s1469 + $0xc0] sm:$0xff]
        %v1495 = vld [vmem:[%s1469 + $0xc8] sm:$0xff]
        %v1496 = vld [vmem:[%s1469 + $0xd0] sm:$0xff]
        %v1497 = vld [vmem:[%s1469 + $0xd8] sm:$0xff]
        %v1498 = vld [vmem:[%s1469 + $0xe0] sm:$0xff]
        %v1499 = vld [vmem:[%s1469 + $0xe8] sm:$0xff]
        %v1500 = vld [vmem:[%s1469 + $0xf0] sm:$0xff]
        %v1501 = vld [vmem:[%s1469 + $0xf8] sm:$0xff]
        %v1534 = vunpack.c.l.b16 %v1437
        %v1535 = vunpack.c.l.b16 %v1438
        %v1536 = vunpack.c.l.b16 %v1439
        %v1537 = vunpack.c.l.b16 %v1440
        %v1538 = vunpack.c.l.b16 %v1441
        %v1539 = vunpack.c.l.b16 %v1442
        %v1540 = vunpack.c.l.b16 %v1443
        %v1541 = vunpack.c.l.b16 %v1444
        %v1542 = vunpack.c.l.b16 %v1445
        %v1543 = vunpack.c.l.b16 %v1446
        %v1544 = vunpack.c.l.b16 %v1447
        %v1545 = vunpack.c.l.b16 %v1448
        %v1546 = vunpack.c.l.b16 %v1449
        %v1547 = vunpack.c.l.b16 %v1450
        %v1548 = vunpack.c.l.b16 %v1451
        %v1549 = vunpack.c.l.b16 %v1452
        %v1550 = vunpack.c.l.b16 %v1453
        %v1551 = vunpack.c.l.b16 %v1454
        %v1552 = vunpack.c.l.b16 %v1455
        %v1553 = vunpack.c.l.b16 %v1456
        %v1554 = vunpack.c.l.b16 %v1457
        %v1555 = vunpack.c.l.b16 %v1458
        %v1556 = vunpack.c.l.b16 %v1459
        %v1557 = vunpack.c.l.b16 %v1460
        %v1558 = vunpack.c.l.b16 %v1461
        %v1559 = vunpack.c.l.b16 %v1462
        %v1560 = vunpack.c.l.b16 %v1463
        %v1561 = vunpack.c.l.b16 %v1464
        %v1562 = vunpack.c.l.b16 %v1465
        %v1563 = vunpack.c.l.b16 %v1466
        %v1564 = vunpack.c.l.b16 %v1467
        %v1565 = vunpack.c.l.b16 %v1468
        %v1566 = vpack.c.b16 %v1535, %v1534
        %v1567 = vpack.c.b16 %v1537, %v1536
        %v1568 = vpack.c.b16 %v1539, %v1538
        %v1569 = vpack.c.b16 %v1541, %v1540
        %v1570 = vpack.c.b16 %v1543, %v1542
        %v1571 = vpack.c.b16 %v1545, %v1544
        %v1572 = vpack.c.b16 %v1547, %v1546
        %v1573 = vpack.c.b16 %v1549, %v1548
        %v1574 = vpack.c.b16 %v1551, %v1550
        %v1575 = vpack.c.b16 %v1553, %v1552
        %v1576 = vpack.c.b16 %v1555, %v1554
        %v1577 = vpack.c.b16 %v1557, %v1556
        %v1578 = vpack.c.b16 %v1559, %v1558
        %v1579 = vpack.c.b16 %v1561, %v1560
        %v1580 = vpack.c.b16 %v1563, %v1562
        %v1581 = vpack.c.b16 %v1565, %v1564
        %v1583 = vsel %vm411, %v1566, 0
        %v1586 = vsel %vm411, %v1567, 0
        %v1589 = vsel %vm411, %v1568, 0
        %v1592 = vsel %vm411, %v1569, 0
        %v1595 = vsel %vm411, %v1570, 0
        %v1598 = vsel %vm411, %v1571, 0
        %v1601 = vsel %vm411, %v1572, 0
        %v1604 = vsel %vm411, %v1573, 0
        %v1607 = vsel %vm411, %v1574, 0
        %v1610 = vsel %vm411, %v1575, 0
        %v1613 = vsel %vm411, %v1576, 0
        %v1616 = vsel %vm411, %v1577, 0
        %v1619 = vsel %vm411, %v1578, 0
        %v1622 = vsel %vm411, %v1579, 0
        %v1625 = vsel %vm411, %v1580, 0
        %v1628 = vsel %vm411, %v1581, 0
        %1630 = vmatprep.subr.bf16.mxu0 0
        %1631 = vmatpush1.bf16.msra.mxu0 %v407
        %1632 = vmatprep.subr.bf16.mxu0 0
        %1633 = vmatpush1.bf16.msra.mxu0 %v408
        %1634 = vmatprep.subr.bf16.mxu0 0
        %1635 = vmatpush1.bf16.msra.mxu0 0
        %1636 = vmatprep.subr.bf16.mxu0 0
        %1637 = vmatpush1.bf16.msra.mxu0 0
        %1638 = vmatprep.subr.bf16.mxu0 0
        %1639 = vmatpush1.bf16.msra.mxu0 0
        %1640 = vmatprep.subr.bf16.mxu0 0
        %1641 = vmatpush1.bf16.msra.mxu0 0
        %1642 = vmatprep.subr.bf16.mxu0 0
        %1643 = vmatpush1.bf16.msra.mxu0 0
        %1644 = vmatprep.subr.bf16.mxu0 0
        %1645 = vmatpush1.bf16.msra.mxu0 0
        %1646 = vmatprep.subr.bf16.mxu0 0
        %1647 = vmatpush1.bf16.msra.mxu0 0
        %1648 = vmatprep.subr.bf16.mxu0 0
        %1649 = vmatpush1.bf16.msra.mxu0 0
        %1650 = vmatprep.subr.bf16.mxu0 0
        %1651 = vmatpush1.bf16.msra.mxu0 0
        %1652 = vmatprep.subr.bf16.mxu0 0
        %1653 = vmatpush1.bf16.msra.mxu0 0
        %1654 = vmatprep.subr.bf16.mxu0 0
        %1655 = vmatpush1.bf16.msra.mxu0 0
        %1656 = vmatprep.subr.bf16.mxu0 0
        %1657 = vmatpush1.bf16.msra.mxu0 0
        %1658 = vmatprep.subr.bf16.mxu0 0
        %1659 = vmatpush1.bf16.msra.mxu0 0
        %1660 = vmatprep.subr.bf16.mxu0 0
        %1661 = vmatpush1.bf16.msra.mxu0 0
        %1662 = vmatprep.mubr.bf16.mxu0 0
        %1663 = vmatmul.mubr.bf16.gmra.mrb[0].mxu0 %v1583
        %v1664 = vpop.f32.mrb[0].mxu0
        %v1665 = vadd.f32 0.0, %v1664
        %v1666 = vpop.f32.mrb[0].mxu0
        %v1667 = vpop.f32.mrb[0].mxu0
        %v1668 = vadd.f32 0.0, %v1667
        %v1669 = vpop.f32.mrb[0].mxu0
        %1670 = vmatprep.mubr.bf16.mxu0 0
        %1671 = vmatmul.mubr.bf16.gmra.mrb[0].mxu0 %v1586
        %v1672 = vpop.f32.mrb[0].mxu0
        %v1673 = vadd.f32 0.0, %v1672
        %v1674 = vpop.f32.mrb[0].mxu0
        %v1675 = vpop.f32.mrb[0].mxu0
        %v1676 = vadd.f32 0.0, %v1675
        %v1677 = vpop.f32.mrb[0].mxu0
        %1678 = vmatprep.mubr.bf16.mxu0 0
        %1679 = vmatmul.mubr.bf16.gmra.mrb[0].mxu0 %v1589
        %v1680 = vpop.f32.mrb[0].mxu0
        %v1681 = vadd.f32 0.0, %v1680
        %v1682 = vpop.f32.mrb[0].mxu0
        %v1683 = vpop.f32.mrb[0].mxu0
        %v1684 = vadd.f32 0.0, %v1683
        %v1685 = vpop.f32.mrb[0].mxu0
        %1686 = vmatprep.mubr.bf16.mxu0 0
        %1687 = vmatmul.mubr.bf16.gmra.mrb[0].mxu0 %v1592
        %v1688 = vpop.f32.mrb[0].mxu0
        %v1689 = vadd.f32 0.0, %v1688
        %v1690 = vpop.f32.mrb[0].mxu0
        %v1691 = vpop.f32.mrb[0].mxu0
        %v1692 = vadd.f32 0.0, %v1691
        %v1693 = vpop.f32.mrb[0].mxu0
        %1694 = vmatprep.mubr.bf16.mxu0 0
        %1695 = vmatmul.mubr.bf16.gmra.mrb[0].mxu0 %v1595
        %v1696 = vpop.f32.mrb[0].mxu0
        %v1697 = vadd.f32 0.0, %v1696
        %v1698 = vpop.f32.mrb[0].mxu0
        %v1699 = vpop.f32.mrb[0].mxu0
        %v1700 = vadd.f32 0.0, %v1699
        %v1701 = vpop.f32.mrb[0].mxu0
        %1702 = vmatprep.mubr.bf16.mxu0 0
        %1703 = vmatmul.mubr.bf16.gmra.mrb[0].mxu0 %v1598
        %v1704 = vpop.f32.mrb[0].mxu0
        %v1705 = vadd.f32 0.0, %v1704
        %v1706 = vpop.f32.mrb[0].mxu0
        %v1707 = vpop.f32.mrb[0].mxu0
        %v1708 = vadd.f32 0.0, %v1707
        %v1709 = vpop.f32.mrb[0].mxu0
        %1710 = vmatprep.mubr.bf16.mxu0 0
        %1711 = vmatmul.mubr.bf16.gmra.mrb[0].mxu0 %v1601
        %v1712 = vpop.f32.mrb[0].mxu0
        %v1713 = vadd.f32 0.0, %v1712
        %v1714 = vpop.f32.mrb[0].mxu0
        %v1715 = vpop.f32.mrb[0].mxu0
        %v1716 = vadd.f32 0.0, %v1715
        %v1717 = vpop.f32.mrb[0].mxu0
        %1718 = vmatprep.mubr.bf16.mxu0 0
        %1719 = vmatmul.mubr.bf16.gmra.mrb[0].mxu0 %v1604
        %v1720 = vpop.f32.mrb[0].mxu0
        %v1721 = vadd.f32 0.0, %v1720
        %v1722 = vpop.f32.mrb[0].mxu0
        %v1723 = vpop.f32.mrb[0].mxu0
        %v1724 = vadd.f32 0.0, %v1723
        %v1725 = vpop.f32.mrb[0].mxu0
        %1726 = vmatprep.mubr.bf16.mxu0 0
        %1727 = vmatmul.mubr.bf16.gmra.mrb[0].mxu0 %v1607
        %v1728 = vpop.f32.mrb[0].mxu0
        %v1729 = vadd.f32 0.0, %v1728
        %v1730 = vpop.f32.mrb[0].mxu0
        %v1731 = vpop.f32.mrb[0].mxu0
        %v1732 = vadd.f32 0.0, %v1731
        %v1733 = vpop.f32.mrb[0].mxu0
        %1734 = vmatprep.mubr.bf16.mxu0 0
        %1735 = vmatmul.mubr.bf16.gmra.mrb[0].mxu0 %v1610
        %v1736 = vpop.f32.mrb[0].mxu0
        %v1737 = vadd.f32 0.0, %v1736
        %v1738 = vpop.f32.mrb[0].mxu0
        %v1739 = vpop.f32.mrb[0].mxu0
        %v1740 = vadd.f32 0.0, %v1739
        %v1741 = vpop.f32.mrb[0].mxu0
        %1742 = vmatprep.mubr.bf16.mxu0 0
        %1743 = vmatmul.mubr.bf16.gmra.mrb[0].mxu0 %v1613
        %v1744 = vpop.f32.mrb[0].mxu0
        %v1745 = vadd.f32 0.0, %v1744
        %v1746 = vpop.f32.mrb[0].mxu0
        %v1747 = vpop.f32.mrb[0].mxu0
        %v1748 = vadd.f32 0.0, %v1747
        %v1749 = vpop.f32.mrb[0].mxu0
        %1750 = vmatprep.mubr.bf16.mxu0 0
        %1751 = vmatmul.mubr.bf16.gmra.mrb[0].mxu0 %v1616
        %v1752 = vpop.f32.mrb[0].mxu0
        %v1753 = vadd.f32 0.0, %v1752
        %v1754 = vpop.f32.mrb[0].mxu0
        %v1755 = vpop.f32.mrb[0].mxu0
        %v1756 = vadd.f32 0.0, %v1755
        %v1757 = vpop.f32.mrb[0].mxu0
        %1758 = vmatprep.mubr.bf16.mxu0 0
        %1759 = vmatmul.mubr.bf16.gmra.mrb[0].mxu0 %v1619
        %v1760 = vpop.f32.mrb[0].mxu0
        %v1761 = vadd.f32 0.0, %v1760
        %v1762 = vpop.f32.mrb[0].mxu0
        %v1763 = vpop.f32.mrb[0].mxu0
        %v1764 = vadd.f32 0.0, %v1763
        %v1765 = vpop.f32.mrb[0].mxu0
        %1766 = vmatprep.mubr.bf16.mxu0 0
        %1767 = vmatmul.mubr.bf16.gmra.mrb[0].mxu0 %v1622
        %v1768 = vpop.f32.mrb[0].mxu0
        %v1769 = vadd.f32 0.0, %v1768
        %v1770 = vpop.f32.mrb[0].mxu0
        %v1771 = vpop.f32.mrb[0].mxu0
        %v1772 = vadd.f32 0.0, %v1771
        %v1773 = vpop.f32.mrb[0].mxu0
        %1774 = vmatprep.mubr.bf16.mxu0 0
        %1775 = vmatmul.mubr.bf16.gmra.mrb[0].mxu0 %v1625
        %v1776 = vpop.f32.mrb[0].mxu0
        %v1777 = vadd.f32 0.0, %v1776
        %v1778 = vpop.f32.mrb[0].mxu0
        %v1779 = vpop.f32.mrb[0].mxu0
        %v1780 = vadd.f32 0.0, %v1779
        %v1781 = vpop.f32.mrb[0].mxu0
        %1782 = vmatprep.mubr.bf16.mxu0 0
        %1783 = vmatmul.mubr.bf16.gmra.mrb[0].mxu0 %v1628
        %v1784 = vpop.f32.mrb[0].mxu0
        %v1785 = vadd.f32 0.0, %v1784
        %v1786 = vpop.f32.mrb[0].mxu0
        %v1787 = vpop.f32.mrb[0].mxu0
        %v1788 = vadd.f32 0.0, %v1787
        %v1789 = vpop.f32.mrb[0].mxu0
        %1790 = vdwg.mxu0
        %1792 = vset.pattern.permute.xlu0 0
        %1793 = vperm.xlu0 %1792, %v1470
        %v1794 = vpop.permute.xlu0 %1793
        %1797 = vset.pattern.permute.xlu0 0
        %1798 = vperm.xlu0 %1797, %v1471
        %v1799 = vpop.permute.xlu0 %1798
        %1802 = vset.pattern.permute.xlu0 0
        %1803 = vperm.xlu0 %1802, %v1472
        %v1804 = vpop.permute.xlu0 %1803
        %1807 = vset.pattern.permute.xlu0 0
        %1808 = vperm.xlu0 %1807, %v1473
        %v1809 = vpop.permute.xlu0 %1808
        %1812 = vset.pattern.permute.xlu0 0
        %1813 = vperm.xlu0 %1812, %v1474
        %v1814 = vpop.permute.xlu0 %1813
        %1817 = vset.pattern.permute.xlu0 0
        %1818 = vperm.xlu0 %1817, %v1475
        %v1819 = vpop.permute.xlu0 %1818
        %1822 = vset.pattern.permute.xlu0 0
        %1823 = vperm.xlu0 %1822, %v1476
        %v1824 = vpop.permute.xlu0 %1823
        %1827 = vset.pattern.permute.xlu0 0
        %1828 = vperm.xlu0 %1827, %v1477
        %v1829 = vpop.permute.xlu0 %1828
        %1832 = vset.pattern.permute.xlu0 0
        %1833 = vperm.xlu0 %1832, %v1478
        %v1834 = vpop.permute.xlu0 %1833
        %1837 = vset.pattern.permute.xlu0 0
        %1838 = vperm.xlu0 %1837, %v1479
        %v1839 = vpop.permute.xlu0 %1838
        %1842 = vset.pattern.permute.xlu0 0
        %1843 = vperm.xlu0 %1842, %v1480
        %v1844 = vpop.permute.xlu0 %1843
        %1847 = vset.pattern.permute.xlu0 0
        %1848 = vperm.xlu0 %1847, %v1481
        %v1849 = vpop.permute.xlu0 %1848
        %1852 = vset.pattern.permute.xlu0 0
        %1853 = vperm.xlu0 %1852, %v1482
        %v1854 = vpop.permute.xlu0 %1853
        %1857 = vset.pattern.permute.xlu0 0
        %1858 = vperm.xlu0 %1857, %v1483
        %v1859 = vpop.permute.xlu0 %1858
        %1862 = vset.pattern.permute.xlu0 0
        %1863 = vperm.xlu0 %1862, %v1484
        %v1864 = vpop.permute.xlu0 %1863
        %1867 = vset.pattern.permute.xlu0 0
        %1868 = vperm.xlu0 %1867, %v1485
        %v1869 = vpop.permute.xlu0 %1868
        %1872 = vset.pattern.permute.xlu0 0
        %1873 = vperm.xlu0 %1872, %v1486
        %v1874 = vpop.permute.xlu0 %1873
        %1877 = vset.pattern.permute.xlu0 0
        %1878 = vperm.xlu0 %1877, %v1487
        %v1879 = vpop.permute.xlu0 %1878
        %1882 = vset.pattern.permute.xlu0 0
        %1883 = vperm.xlu0 %1882, %v1488
        %v1884 = vpop.permute.xlu0 %1883
        %1887 = vset.pattern.permute.xlu0 0
        %1888 = vperm.xlu0 %1887, %v1489
        %v1889 = vpop.permute.xlu0 %1888
        %1892 = vset.pattern.permute.xlu0 0
        %1893 = vperm.xlu0 %1892, %v1490
        %v1894 = vpop.permute.xlu0 %1893
        %1897 = vset.pattern.permute.xlu0 0
        %1898 = vperm.xlu0 %1897, %v1491
        %v1899 = vpop.permute.xlu0 %1898
        %1902 = vset.pattern.permute.xlu0 0
        %1903 = vperm.xlu0 %1902, %v1492
        %v1904 = vpop.permute.xlu0 %1903
        %1907 = vset.pattern.permute.xlu0 0
        %1908 = vperm.xlu0 %1907, %v1493
        %v1909 = vpop.permute.xlu0 %1908
        %1912 = vset.pattern.permute.xlu0 0
        %1913 = vperm.xlu0 %1912, %v1494
        %v1914 = vpop.permute.xlu0 %1913
        %1917 = vset.pattern.permute.xlu0 0
        %1918 = vperm.xlu0 %1917, %v1495
        %v1919 = vpop.permute.xlu0 %1918
        %1922 = vset.pattern.permute.xlu0 0
        %1923 = vperm.xlu0 %1922, %v1496
        %v1924 = vpop.permute.xlu0 %1923
        %1927 = vset.pattern.permute.xlu0 0
        %1928 = vperm.xlu0 %1927, %v1497
        %v1929 = vpop.permute.xlu0 %1928
        %1932 = vset.pattern.permute.xlu0 0
        %1933 = vperm.xlu0 %1932, %v1498
        %v1934 = vpop.permute.xlu0 %1933
        %1937 = vset.pattern.permute.xlu0 0
        %1938 = vperm.xlu0 %1937, %v1499
        %v1939 = vpop.permute.xlu0 %1938
        %1942 = vset.pattern.permute.xlu0 0
        %1943 = vperm.xlu0 %1942, %v1500
        %v1944 = vpop.permute.xlu0 %1943
        %1947 = vset.pattern.permute.xlu0 0
        %1948 = vperm.xlu0 %1947, %v1501
        %v1949 = vpop.permute.xlu0 %1948
        %v1951 = vmul.f32 %v1665, %v1794
        %v1952 = vmul.f32 %v1668, %v1799
        %v1953 = vmul.f32 %v1673, %v1804
        %v1954 = vmul.f32 %v1676, %v1809
        %v1955 = vmul.f32 %v1681, %v1814
        %v1956 = vmul.f32 %v1684, %v1819
        %v1957 = vmul.f32 %v1689, %v1824
        %v1958 = vmul.f32 %v1692, %v1829
        %v1959 = vmul.f32 %v1697, %v1834
        %v1960 = vmul.f32 %v1700, %v1839
        %v1961 = vmul.f32 %v1705, %v1844
        %v1962 = vmul.f32 %v1708, %v1849
        %v1963 = vmul.f32 %v1713, %v1854
        %v1964 = vmul.f32 %v1716, %v1859
        %v1965 = vmul.f32 %v1721, %v1864
        %v1966 = vmul.f32 %v1724, %v1869
        %v1967 = vmul.f32 %v1729, %v1874
        %v1968 = vmul.f32 %v1732, %v1879
        %v1969 = vmul.f32 %v1737, %v1884
        %v1970 = vmul.f32 %v1740, %v1889
        %v1971 = vmul.f32 %v1745, %v1894
        %v1972 = vmul.f32 %v1748, %v1899
        %v1973 = vmul.f32 %v1753, %v1904
        %v1974 = vmul.f32 %v1756, %v1909
        %v1975 = vmul.f32 %v1761, %v1914
        %v1976 = vmul.f32 %v1764, %v1919
        %v1977 = vmul.f32 %v1769, %v1924
        %v1978 = vmul.f32 %v1772, %v1929
        %v1979 = vmul.f32 %v1777, %v1934
        %v1980 = vmul.f32 %v1780, %v1939
        %v1981 = vmul.f32 %v1785, %v1944
        %v1982 = vmul.f32 %v1788, %v1949
        %v1983 = vadd.f32 %v1951, %v1952
        %v1984 = vadd.f32 %v1983, %v1953
        %v1985 = vadd.f32 %v1984, %v1954
        %v1986 = vadd.f32 %v1985, %v1955
        %v1987 = vadd.f32 %v1986, %v1956
        %v1988 = vadd.f32 %v1987, %v1957
        %v1989 = vadd.f32 %v1988, %v1958
        %v1990 = vadd.f32 %v1989, %v1959
        %v1991 = vadd.f32 %v1990, %v1960
        %v1992 = vadd.f32 %v1991, %v1961
        %v1993 = vadd.f32 %v1992, %v1962
        %v1994 = vadd.f32 %v1993, %v1963
        %v1995 = vadd.f32 %v1994, %v1964
        %v1996 = vadd.f32 %v1995, %v1965
        %v1997 = vadd.f32 %v1996, %v1966
        %v1998 = vadd.f32 %v1997, %v1967
        %v1999 = vadd.f32 %v1998, %v1968
        %v2000 = vadd.f32 %v1999, %v1969
        %v2001 = vadd.f32 %v2000, %v1970
        %v2002 = vadd.f32 %v2001, %v1971
        %v2003 = vadd.f32 %v2002, %v1972
        %v2004 = vadd.f32 %v2003, %v1973
        %v2005 = vadd.f32 %v2004, %v1974
        %v2006 = vadd.f32 %v2005, %v1975
        %v2007 = vadd.f32 %v2006, %v1976
        %v2008 = vadd.f32 %v2007, %v1977
        %v2009 = vadd.f32 %v2008, %v1978
        %v2010 = vadd.f32 %v2009, %v1979
        %v2011 = vadd.f32 %v2010, %v1980
        %v2012 = vadd.f32 %v2011, %v1981
        %v2013 = vadd.f32 %v2012, %v1982
        %v2014 = vrot.slane %v2013, 4
        %v2015 = vadd.f32 %v2013, %v2014
        %v2016 = vrot.slane %v2015, 2
        %v2017 = vadd.f32 %v2015, %v2016
        %v2018 = vrot.slane %v2017, 1
        %v2019 = vadd.f32 %v2017, %v2018
        %v2020 = vadd.f32 %v1435, %v2019
        %s2021 = scalar_lea.vmem %s1, 384
        %v2022 = vld [vmem:[%s2021] sm:$0xf]
        %v2023 = vld [vmem:[%s2021 + $0x4] sm:$0xf]
        %v2024 = vld [vmem:[%s2021 + $0x8] sm:$0xf]
        %v2025 = vld [vmem:[%s2021 + $0xc] sm:$0xf]
        %v2026 = vld [vmem:[%s2021 + $0x10] sm:$0xf]
        %v2027 = vld [vmem:[%s2021 + $0x14] sm:$0xf]
        %v2028 = vld [vmem:[%s2021 + $0x18] sm:$0xf]
        %v2029 = vld [vmem:[%s2021 + $0x1c] sm:$0xf]
        %v2030 = vld [vmem:[%s2021 + $0x20] sm:$0xf]
        %v2031 = vld [vmem:[%s2021 + $0x24] sm:$0xf]
        %v2032 = vld [vmem:[%s2021 + $0x28] sm:$0xf]
        %v2033 = vld [vmem:[%s2021 + $0x2c] sm:$0xf]
        %v2034 = vld [vmem:[%s2021 + $0x30] sm:$0xf]
        %v2035 = vld [vmem:[%s2021 + $0x34] sm:$0xf]
        %v2036 = vld [vmem:[%s2021 + $0x38] sm:$0xf]
        %v2037 = vld [vmem:[%s2021 + $0x3c] sm:$0xf]
        %v2038 = vld [vmem:[%s2021 + $0x40] sm:$0xf]
        %v2039 = vld [vmem:[%s2021 + $0x44] sm:$0xf]
        %v2040 = vld [vmem:[%s2021 + $0x48] sm:$0xf]
        %v2041 = vld [vmem:[%s2021 + $0x4c] sm:$0xf]
        %v2042 = vld [vmem:[%s2021 + $0x50] sm:$0xf]
        %v2043 = vld [vmem:[%s2021 + $0x54] sm:$0xf]
        %v2044 = vld [vmem:[%s2021 + $0x58] sm:$0xf]
        %v2045 = vld [vmem:[%s2021 + $0x5c] sm:$0xf]
        %v2046 = vld [vmem:[%s2021 + $0x60] sm:$0xf]
        %v2047 = vld [vmem:[%s2021 + $0x64] sm:$0xf]
        %v2048 = vld [vmem:[%s2021 + $0x68] sm:$0xf]
        %v2049 = vld [vmem:[%s2021 + $0x6c] sm:$0xf]
        %v2050 = vld [vmem:[%s2021 + $0x70] sm:$0xf]
        %v2051 = vld [vmem:[%s2021 + $0x74] sm:$0xf]
        %v2052 = vld [vmem:[%s2021 + $0x78] sm:$0xf]
        %v2053 = vld [vmem:[%s2021 + $0x7c] sm:$0xf]
        %s2054 = scalar_lea.vmem %s2, 768
        %v2055 = vld [vmem:[%s2054] sm:$0xff]
        %v2056 = vld [vmem:[%s2054 + $0x8] sm:$0xff]
        %v2057 = vld [vmem:[%s2054 + $0x10] sm:$0xff]
        %v2058 = vld [vmem:[%s2054 + $0x18] sm:$0xff]
        %v2059 = vld [vmem:[%s2054 + $0x20] sm:$0xff]
        %v2060 = vld [vmem:[%s2054 + $0x28] sm:$0xff]
        %v2061 = vld [vmem:[%s2054 + $0x30] sm:$0xff]
        %v2062 = vld [vmem:[%s2054 + $0x38] sm:$0xff]
        %v2063 = vld [vmem:[%s2054 + $0x40] sm:$0xff]
        %v2064 = vld [vmem:[%s2054 + $0x48] sm:$0xff]
        %v2065 = vld [vmem:[%s2054 + $0x50] sm:$0xff]
        %v2066 = vld [vmem:[%s2054 + $0x58] sm:$0xff]
        %v2067 = vld [vmem:[%s2054 + $0x60] sm:$0xff]
        %v2068 = vld [vmem:[%s2054 + $0x68] sm:$0xff]
        %v2069 = vld [vmem:[%s2054 + $0x70] sm:$0xff]
        %v2070 = vld [vmem:[%s2054 + $0x78] sm:$0xff]
        %v2071 = vld [vmem:[%s2054 + $0x80] sm:$0xff]
        %v2072 = vld [vmem:[%s2054 + $0x88] sm:$0xff]
        %v2073 = vld [vmem:[%s2054 + $0x90] sm:$0xff]
        %v2074 = vld [vmem:[%s2054 + $0x98] sm:$0xff]
        %v2075 = vld [vmem:[%s2054 + $0xa0] sm:$0xff]
        %v2076 = vld [vmem:[%s2054 + $0xa8] sm:$0xff]
        %v2077 = vld [vmem:[%s2054 + $0xb0] sm:$0xff]
        %v2078 = vld [vmem:[%s2054 + $0xb8] sm:$0xff]
        %v2079 = vld [vmem:[%s2054 + $0xc0] sm:$0xff]
        %v2080 = vld [vmem:[%s2054 + $0xc8] sm:$0xff]
        %v2081 = vld [vmem:[%s2054 + $0xd0] sm:$0xff]
        %v2082 = vld [vmem:[%s2054 + $0xd8] sm:$0xff]
        %v2083 = vld [vmem:[%s2054 + $0xe0] sm:$0xff]
        %v2084 = vld [vmem:[%s2054 + $0xe8] sm:$0xff]
        %v2085 = vld [vmem:[%s2054 + $0xf0] sm:$0xff]
        %v2086 = vld [vmem:[%s2054 + $0xf8] sm:$0xff]
        %v2119 = vunpack.c.l.b16 %v2022
        %v2120 = vunpack.c.l.b16 %v2023
        %v2121 = vunpack.c.l.b16 %v2024
        %v2122 = vunpack.c.l.b16 %v2025
        %v2123 = vunpack.c.l.b16 %v2026
        %v2124 = vunpack.c.l.b16 %v2027
        %v2125 = vunpack.c.l.b16 %v2028
        %v2126 = vunpack.c.l.b16 %v2029
        %v2127 = vunpack.c.l.b16 %v2030
        %v2128 = vunpack.c.l.b16 %v2031
        %v2129 = vunpack.c.l.b16 %v2032
        %v2130 = vunpack.c.l.b16 %v2033
        %v2131 = vunpack.c.l.b16 %v2034
        %v2132 = vunpack.c.l.b16 %v2035
        %v2133 = vunpack.c.l.b16 %v2036
        %v2134 = vunpack.c.l.b16 %v2037
        %v2135 = vunpack.c.l.b16 %v2038
        %v2136 = vunpack.c.l.b16 %v2039
        %v2137 = vunpack.c.l.b16 %v2040
        %v2138 = vunpack.c.l.b16 %v2041
        %v2139 = vunpack.c.l.b16 %v2042
        %v2140 = vunpack.c.l.b16 %v2043
        %v2141 = vunpack.c.l.b16 %v2044
        %v2142 = vunpack.c.l.b16 %v2045
        %v2143 = vunpack.c.l.b16 %v2046
        %v2144 = vunpack.c.l.b16 %v2047
        %v2145 = vunpack.c.l.b16 %v2048
        %v2146 = vunpack.c.l.b16 %v2049
        %v2147 = vunpack.c.l.b16 %v2050
        %v2148 = vunpack.c.l.b16 %v2051
        %v2149 = vunpack.c.l.b16 %v2052
        %v2150 = vunpack.c.l.b16 %v2053
        %v2151 = vpack.c.b16 %v2120, %v2119
        %v2152 = vpack.c.b16 %v2122, %v2121
        %v2153 = vpack.c.b16 %v2124, %v2123
        %v2154 = vpack.c.b16 %v2126, %v2125
        %v2155 = vpack.c.b16 %v2128, %v2127
        %v2156 = vpack.c.b16 %v2130, %v2129
        %v2157 = vpack.c.b16 %v2132, %v2131
        %v2158 = vpack.c.b16 %v2134, %v2133
        %v2159 = vpack.c.b16 %v2136, %v2135
        %v2160 = vpack.c.b16 %v2138, %v2137
        %v2161 = vpack.c.b16 %v2140, %v2139
        %v2162 = vpack.c.b16 %v2142, %v2141
        %v2163 = vpack.c.b16 %v2144, %v2143
        %v2164 = vpack.c.b16 %v2146, %v2145
        %v2165 = vpack.c.b16 %v2148, %v2147
        %v2166 = vpack.c.b16 %v2150, %v2149
        %v2168 = vsel %vm411, %v2151, 0
        %v2171 = vsel %vm411, %v2152, 0
        %v2174 = vsel %vm411, %v2153, 0
        %v2177 = vsel %vm411, %v2154, 0
        %v2180 = vsel %vm411, %v2155, 0
        %v2183 = vsel %vm411, %v2156, 0
        %v2186 = vsel %vm411, %v2157, 0
        %v2189 = vsel %vm411, %v2158, 0
        %v2192 = vsel %vm411, %v2159, 0
        %v2195 = vsel %vm411, %v2160, 0
        %v2198 = vsel %vm411, %v2161, 0
        %v2201 = vsel %vm411, %v2162, 0
        %v2204 = vsel %vm411, %v2163, 0
        %v2207 = vsel %vm411, %v2164, 0
        %v2210 = vsel %vm411, %v2165, 0
        %v2213 = vsel %vm411, %v2166, 0
        %2215 = vmatprep.subr.bf16.mxu0 0
        %2216 = vmatpush1.bf16.msra.mxu0 %v407
        %2217 = vmatprep.subr.bf16.mxu0 0
        %2218 = vmatpush1.bf16.msra.mxu0 %v408
        %2219 = vmatprep.subr.bf16.mxu0 0
        %2220 = vmatpush1.bf16.msra.mxu0 0
        %2221 = vmatprep.subr.bf16.mxu0 0
        %2222 = vmatpush1.bf16.msra.mxu0 0
        %2223 = vmatprep.subr.bf16.mxu0 0
        %2224 = vmatpush1.bf16.msra.mxu0 0
        %2225 = vmatprep.subr.bf16.mxu0 0
        %2226 = vmatpush1.bf16.msra.mxu0 0
        %2227 = vmatprep.subr.bf16.mxu0 0
        %2228 = vmatpush1.bf16.msra.mxu0 0
        %2229 = vmatprep.subr.bf16.mxu0 0
        %2230 = vmatpush1.bf16.msra.mxu0 0
        %2231 = vmatprep.subr.bf16.mxu0 0
        %2232 = vmatpush1.bf16.msra.mxu0 0
        %2233 = vmatprep.subr.bf16.mxu0 0
        %2234 = vmatpush1.bf16.msra.mxu0 0
        %2235 = vmatprep.subr.bf16.mxu0 0
        %2236 = vmatpush1.bf16.msra.mxu0 0
        %2237 = vmatprep.subr.bf16.mxu0 0
        %2238 = vmatpush1.bf16.msra.mxu0 0
        %2239 = vmatprep.subr.bf16.mxu0 0
        %2240 = vmatpush1.bf16.msra.mxu0 0
        %2241 = vmatprep.subr.bf16.mxu0 0
        %2242 = vmatpush1.bf16.msra.mxu0 0
        %2243 = vmatprep.subr.bf16.mxu0 0
        %2244 = vmatpush1.bf16.msra.mxu0 0
        %2245 = vmatprep.subr.bf16.mxu0 0
        %2246 = vmatpush1.bf16.msra.mxu0 0
        %2247 = vmatprep.mubr.bf16.mxu0 0
        %2248 = vmatmul.mubr.bf16.gmra.mrb[0].mxu0 %v2168
        %v2249 = vpop.f32.mrb[0].mxu0
        %v2250 = vadd.f32 0.0, %v2249
        %v2251 = vpop.f32.mrb[0].mxu0
        %v2252 = vpop.f32.mrb[0].mxu0
        %v2253 = vadd.f32 0.0, %v2252
        %v2254 = vpop.f32.mrb[0].mxu0
        %2255 = vmatprep.mubr.bf16.mxu0 0
        %2256 = vmatmul.mubr.bf16.gmra.mrb[0].mxu0 %v2171
        %v2257 = vpop.f32.mrb[0].mxu0
        %v2258 = vadd.f32 0.0, %v2257
        %v2259 = vpop.f32.mrb[0].mxu0
        %v2260 = vpop.f32.mrb[0].mxu0
        %v2261 = vadd.f32 0.0, %v2260
        %v2262 = vpop.f32.mrb[0].mxu0
        %2263 = vmatprep.mubr.bf16.mxu0 0
        %2264 = vmatmul.mubr.bf16.gmra.mrb[0].mxu0 %v2174
        %v2265 = vpop.f32.mrb[0].mxu0
        %v2266 = vadd.f32 0.0, %v2265
        %v2267 = vpop.f32.mrb[0].mxu0
        %v2268 = vpop.f32.mrb[0].mxu0
        %v2269 = vadd.f32 0.0, %v2268
        %v2270 = vpop.f32.mrb[0].mxu0
        %2271 = vmatprep.mubr.bf16.mxu0 0
        %2272 = vmatmul.mubr.bf16.gmra.mrb[0].mxu0 %v2177
        %v2273 = vpop.f32.mrb[0].mxu0
        %v2274 = vadd.f32 0.0, %v2273
        %v2275 = vpop.f32.mrb[0].mxu0
        %v2276 = vpop.f32.mrb[0].mxu0
        %v2277 = vadd.f32 0.0, %v2276
        %v2278 = vpop.f32.mrb[0].mxu0
        %2279 = vmatprep.mubr.bf16.mxu0 0
        %2280 = vmatmul.mubr.bf16.gmra.mrb[0].mxu0 %v2180
        %v2281 = vpop.f32.mrb[0].mxu0
        %v2282 = vadd.f32 0.0, %v2281
        %v2283 = vpop.f32.mrb[0].mxu0
        %v2284 = vpop.f32.mrb[0].mxu0
        %v2285 = vadd.f32 0.0, %v2284
        %v2286 = vpop.f32.mrb[0].mxu0
        %2287 = vmatprep.mubr.bf16.mxu0 0
        %2288 = vmatmul.mubr.bf16.gmra.mrb[0].mxu0 %v2183
        %v2289 = vpop.f32.mrb[0].mxu0
        %v2290 = vadd.f32 0.0, %v2289
        %v2291 = vpop.f32.mrb[0].mxu0
        %v2292 = vpop.f32.mrb[0].mxu0
        %v2293 = vadd.f32 0.0, %v2292
        %v2294 = vpop.f32.mrb[0].mxu0
        %2295 = vmatprep.mubr.bf16.mxu0 0
        %2296 = vmatmul.mubr.bf16.gmra.mrb[0].mxu0 %v2186
        %v2297 = vpop.f32.mrb[0].mxu0
        %v2298 = vadd.f32 0.0, %v2297
        %v2299 = vpop.f32.mrb[0].mxu0
        %v2300 = vpop.f32.mrb[0].mxu0
        %v2301 = vadd.f32 0.0, %v2300
        %v2302 = vpop.f32.mrb[0].mxu0
        %2303 = vmatprep.mubr.bf16.mxu0 0
        %2304 = vmatmul.mubr.bf16.gmra.mrb[0].mxu0 %v2189
        %v2305 = vpop.f32.mrb[0].mxu0
        %v2306 = vadd.f32 0.0, %v2305
        %v2307 = vpop.f32.mrb[0].mxu0
        %v2308 = vpop.f32.mrb[0].mxu0
        %v2309 = vadd.f32 0.0, %v2308
        %v2310 = vpop.f32.mrb[0].mxu0
        %2311 = vmatprep.mubr.bf16.mxu0 0
        %2312 = vmatmul.mubr.bf16.gmra.mrb[0].mxu0 %v2192
        %v2313 = vpop.f32.mrb[0].mxu0
        %v2314 = vadd.f32 0.0, %v2313
        %v2315 = vpop.f32.mrb[0].mxu0
        %v2316 = vpop.f32.mrb[0].mxu0
        %v2317 = vadd.f32 0.0, %v2316
        %v2318 = vpop.f32.mrb[0].mxu0
        %2319 = vmatprep.mubr.bf16.mxu0 0
        %2320 = vmatmul.mubr.bf16.gmra.mrb[0].mxu0 %v2195
        %v2321 = vpop.f32.mrb[0].mxu0
        %v2322 = vadd.f32 0.0, %v2321
        %v2323 = vpop.f32.mrb[0].mxu0
        %v2324 = vpop.f32.mrb[0].mxu0
        %v2325 = vadd.f32 0.0, %v2324
        %v2326 = vpop.f32.mrb[0].mxu0
        %2327 = vmatprep.mubr.bf16.mxu0 0
        %2328 = vmatmul.mubr.bf16.gmra.mrb[0].mxu0 %v2198
        %v2329 = vpop.f32.mrb[0].mxu0
        %v2330 = vadd.f32 0.0, %v2329
        %v2331 = vpop.f32.mrb[0].mxu0
        %v2332 = vpop.f32.mrb[0].mxu0
        %v2333 = vadd.f32 0.0, %v2332
        %v2334 = vpop.f32.mrb[0].mxu0
        %2335 = vmatprep.mubr.bf16.mxu0 0
        %2336 = vmatmul.mubr.bf16.gmra.mrb[0].mxu0 %v2201
        %v2337 = vpop.f32.mrb[0].mxu0
        %v2338 = vadd.f32 0.0, %v2337
        %v2339 = vpop.f32.mrb[0].mxu0
        %v2340 = vpop.f32.mrb[0].mxu0
        %v2341 = vadd.f32 0.0, %v2340
        %v2342 = vpop.f32.mrb[0].mxu0
        %2343 = vmatprep.mubr.bf16.mxu0 0
        %2344 = vmatmul.mubr.bf16.gmra.mrb[0].mxu0 %v2204
        %v2345 = vpop.f32.mrb[0].mxu0
        %v2346 = vadd.f32 0.0, %v2345
        %v2347 = vpop.f32.mrb[0].mxu0
        %v2348 = vpop.f32.mrb[0].mxu0
        %v2349 = vadd.f32 0.0, %v2348
        %v2350 = vpop.f32.mrb[0].mxu0
        %2351 = vmatprep.mubr.bf16.mxu0 0
        %2352 = vmatmul.mubr.bf16.gmra.mrb[0].mxu0 %v2207
        %v2353 = vpop.f32.mrb[0].mxu0
        %v2354 = vadd.f32 0.0, %v2353
        %v2355 = vpop.f32.mrb[0].mxu0
        %v2356 = vpop.f32.mrb[0].mxu0
        %v2357 = vadd.f32 0.0, %v2356
        %v2358 = vpop.f32.mrb[0].mxu0
        %2359 = vmatprep.mubr.bf16.mxu0 0
        %2360 = vmatmul.mubr.bf16.gmra.mrb[0].mxu0 %v2210
        %v2361 = vpop.f32.mrb[0].mxu0
        %v2362 = vadd.f32 0.0, %v2361
        %v2363 = vpop.f32.mrb[0].mxu0
        %v2364 = vpop.f32.mrb[0].mxu0
        %v2365 = vadd.f32 0.0, %v2364
        %v2366 = vpop.f32.mrb[0].mxu0
        %2367 = vmatprep.mubr.bf16.mxu0 0
        %2368 = vmatmul.mubr.bf16.gmra.mrb[0].mxu0 %v2213
        %v2369 = vpop.f32.mrb[0].mxu0
        %v2370 = vadd.f32 0.0, %v2369
        %v2371 = vpop.f32.mrb[0].mxu0
        %v2372 = vpop.f32.mrb[0].mxu0
        %v2373 = vadd.f32 0.0, %v2372
        %v2374 = vpop.f32.mrb[0].mxu0
        %2375 = vdwg.mxu0
        %2377 = vset.pattern.permute.xlu0 0
        %2378 = vperm.xlu0 %2377, %v2055
        %v2379 = vpop.permute.xlu0 %2378
        %2382 = vset.pattern.permute.xlu0 0
        %2383 = vperm.xlu0 %2382, %v2056
        %v2384 = vpop.permute.xlu0 %2383
        %2387 = vset.pattern.permute.xlu0 0
        %2388 = vperm.xlu0 %2387, %v2057
        %v2389 = vpop.permute.xlu0 %2388
        %2392 = vset.pattern.permute.xlu0 0
        %2393 = vperm.xlu0 %2392, %v2058
        %v2394 = vpop.permute.xlu0 %2393
        %2397 = vset.pattern.permute.xlu0 0
        %2398 = vperm.xlu0 %2397, %v2059
        %v2399 = vpop.permute.xlu0 %2398
        %2402 = vset.pattern.permute.xlu0 0
        %2403 = vperm.xlu0 %2402, %v2060
        %v2404 = vpop.permute.xlu0 %2403
        %2407 = vset.pattern.permute.xlu0 0
        %2408 = vperm.xlu0 %2407, %v2061
        %v2409 = vpop.permute.xlu0 %2408
        %2412 = vset.pattern.permute.xlu0 0
        %2413 = vperm.xlu0 %2412, %v2062
        %v2414 = vpop.permute.xlu0 %2413
        %2417 = vset.pattern.permute.xlu0 0
        %2418 = vperm.xlu0 %2417, %v2063
        %v2419 = vpop.permute.xlu0 %2418
        %2422 = vset.pattern.permute.xlu0 0
        %2423 = vperm.xlu0 %2422, %v2064
        %v2424 = vpop.permute.xlu0 %2423
        %2427 = vset.pattern.permute.xlu0 0
        %2428 = vperm.xlu0 %2427, %v2065
        %v2429 = vpop.permute.xlu0 %2428
        %2432 = vset.pattern.permute.xlu0 0
        %2433 = vperm.xlu0 %2432, %v2066
        %v2434 = vpop.permute.xlu0 %2433
        %2437 = vset.pattern.permute.xlu0 0
        %2438 = vperm.xlu0 %2437, %v2067
        %v2439 = vpop.permute.xlu0 %2438
        %2442 = vset.pattern.permute.xlu0 0
        %2443 = vperm.xlu0 %2442, %v2068
        %v2444 = vpop.permute.xlu0 %2443
        %2447 = vset.pattern.permute.xlu0 0
        %2448 = vperm.xlu0 %2447, %v2069
        %v2449 = vpop.permute.xlu0 %2448
        %2452 = vset.pattern.permute.xlu0 0
        %2453 = vperm.xlu0 %2452, %v2070
        %v2454 = vpop.permute.xlu0 %2453
        %2457 = vset.pattern.permute.xlu0 0
        %2458 = vperm.xlu0 %2457, %v2071
        %v2459 = vpop.permute.xlu0 %2458
        %2462 = vset.pattern.permute.xlu0 0
        %2463 = vperm.xlu0 %2462, %v2072
        %v2464 = vpop.permute.xlu0 %2463
        %2467 = vset.pattern.permute.xlu0 0
        %2468 = vperm.xlu0 %2467, %v2073
        %v2469 = vpop.permute.xlu0 %2468
        %2472 = vset.pattern.permute.xlu0 0
        %2473 = vperm.xlu0 %2472, %v2074
        %v2474 = vpop.permute.xlu0 %2473
        %2477 = vset.pattern.permute.xlu0 0
        %2478 = vperm.xlu0 %2477, %v2075
        %v2479 = vpop.permute.xlu0 %2478
        %2482 = vset.pattern.permute.xlu0 0
        %2483 = vperm.xlu0 %2482, %v2076
        %v2484 = vpop.permute.xlu0 %2483
        %2487 = vset.pattern.permute.xlu0 0
        %2488 = vperm.xlu0 %2487, %v2077
        %v2489 = vpop.permute.xlu0 %2488
        %2492 = vset.pattern.permute.xlu0 0
        %2493 = vperm.xlu0 %2492, %v2078
        %v2494 = vpop.permute.xlu0 %2493
        %2497 = vset.pattern.permute.xlu0 0
        %2498 = vperm.xlu0 %2497, %v2079
        %v2499 = vpop.permute.xlu0 %2498
        %2502 = vset.pattern.permute.xlu0 0
        %2503 = vperm.xlu0 %2502, %v2080
        %v2504 = vpop.permute.xlu0 %2503
        %2507 = vset.pattern.permute.xlu0 0
        %2508 = vperm.xlu0 %2507, %v2081
        %v2509 = vpop.permute.xlu0 %2508
        %2512 = vset.pattern.permute.xlu0 0
        %2513 = vperm.xlu0 %2512, %v2082
        %v2514 = vpop.permute.xlu0 %2513
        %2517 = vset.pattern.permute.xlu0 0
        %2518 = vperm.xlu0 %2517, %v2083
        %v2519 = vpop.permute.xlu0 %2518
        %2522 = vset.pattern.permute.xlu0 0
        %2523 = vperm.xlu0 %2522, %v2084
        %v2524 = vpop.permute.xlu0 %2523
        %2527 = vset.pattern.permute.xlu0 0
        %2528 = vperm.xlu0 %2527, %v2085
        %v2529 = vpop.permute.xlu0 %2528
        %2532 = vset.pattern.permute.xlu0 0
        %2533 = vperm.xlu0 %2532, %v2086
        %v2534 = vpop.permute.xlu0 %2533
        %v2536 = vmul.f32 %v2250, %v2379
        %v2537 = vmul.f32 %v2253, %v2384
        %v2538 = vmul.f32 %v2258, %v2389
        %v2539 = vmul.f32 %v2261, %v2394
        %v2540 = vmul.f32 %v2266, %v2399
        %v2541 = vmul.f32 %v2269, %v2404
        %v2542 = vmul.f32 %v2274, %v2409
        %v2543 = vmul.f32 %v2277, %v2414
        %v2544 = vmul.f32 %v2282, %v2419
        %v2545 = vmul.f32 %v2285, %v2424
        %v2546 = vmul.f32 %v2290, %v2429
        %v2547 = vmul.f32 %v2293, %v2434
        %v2548 = vmul.f32 %v2298, %v2439
        %v2549 = vmul.f32 %v2301, %v2444
        %v2550 = vmul.f32 %v2306, %v2449
        %v2551 = vmul.f32 %v2309, %v2454
        %v2552 = vmul.f32 %v2314, %v2459
        %v2553 = vmul.f32 %v2317, %v2464
        %v2554 = vmul.f32 %v2322, %v2469
        %v2555 = vmul.f32 %v2325, %v2474
        %v2556 = vmul.f32 %v2330, %v2479
        %v2557 = vmul.f32 %v2333, %v2484
        %v2558 = vmul.f32 %v2338, %v2489
        %v2559 = vmul.f32 %v2341, %v2494
        %v2560 = vmul.f32 %v2346, %v2499
        %v2561 = vmul.f32 %v2349, %v2504
        %v2562 = vmul.f32 %v2354, %v2509
        %v2563 = vmul.f32 %v2357, %v2514
        %v2564 = vmul.f32 %v2362, %v2519
        %v2565 = vmul.f32 %v2365, %v2524
        %v2566 = vmul.f32 %v2370, %v2529
        %v2567 = vmul.f32 %v2373, %v2534
        %v2568 = vadd.f32 %v2536, %v2537
        %v2569 = vadd.f32 %v2568, %v2538
        %v2570 = vadd.f32 %v2569, %v2539
        %v2571 = vadd.f32 %v2570, %v2540
        %v2572 = vadd.f32 %v2571, %v2541
        %v2573 = vadd.f32 %v2572, %v2542
        %v2574 = vadd.f32 %v2573, %v2543
        %v2575 = vadd.f32 %v2574, %v2544
        %v2576 = vadd.f32 %v2575, %v2545
        %v2577 = vadd.f32 %v2576, %v2546
        %v2578 = vadd.f32 %v2577, %v2547
        %v2579 = vadd.f32 %v2578, %v2548
        %v2580 = vadd.f32 %v2579, %v2549
        %v2581 = vadd.f32 %v2580, %v2550
        %v2582 = vadd.f32 %v2581, %v2551
        %v2583 = vadd.f32 %v2582, %v2552
        %v2584 = vadd.f32 %v2583, %v2553
        %v2585 = vadd.f32 %v2584, %v2554
        %v2586 = vadd.f32 %v2585, %v2555
        %v2587 = vadd.f32 %v2586, %v2556
        %v2588 = vadd.f32 %v2587, %v2557
        %v2589 = vadd.f32 %v2588, %v2558
        %v2590 = vadd.f32 %v2589, %v2559
        %v2591 = vadd.f32 %v2590, %v2560
        %v2592 = vadd.f32 %v2591, %v2561
        %v2593 = vadd.f32 %v2592, %v2562
        %v2594 = vadd.f32 %v2593, %v2563
        %v2595 = vadd.f32 %v2594, %v2564
        %v2596 = vadd.f32 %v2595, %v2565
        %v2597 = vadd.f32 %v2596, %v2566
        %v2598 = vadd.f32 %v2597, %v2567
        %v2599 = vrot.slane %v2598, 4
        %v2600 = vadd.f32 %v2598, %v2599
        %v2601 = vrot.slane %v2600, 2
        %v2602 = vadd.f32 %v2600, %v2601
        %v2603 = vrot.slane %v2602, 1
        %v2604 = vadd.f32 %v2602, %v2603
        %v2605 = vadd.f32 %v2020, %v2604
        %v2606 = vld [vmem:[#allocation2] sm:$0x1]
        %2608 = vset.pattern.permute.xlu0 0
        %2609 = vperm.xlu0 %2608, %v2606
        %v2610 = vpop.permute.xlu0 %2609
        %v2612 = vlaneseq
        %v2613 = vshrl.u32 %v2612, 7
        %v2614 = vsub.s32 0, %v2613
        %v2615 = vrot.slane %v2610, %v2614
        %v2616 = vadd.f32 %v2605, %v2615
        %2617 = vst [vmem:[%s249] sm:$0x1] %v2616
        %s2618 = sand.u32 %s117, 1
        %s2619 = scalar_lea.sflag [#allocation5], %s2618
        %s2620 = sand.u32 %s117, 1
        %s2621 = scalar_lea.vmem [#allocation4], %s2620
        // Predicated region
        $region78: #{tpu_custom_call.1} parent=72 // pred_check
          %p2622 = pneg %p127
        $region79: #{tpu_custom_call.1} parent=72 // pred_check_branch
          %2624 = sbr.rel (%p2622) target = $region81
        $region80: #{tpu_custom_call.1} parent=72 // pred_region
          %s2626 = ssub.s32 16, 16
          %2627 = vsyncadd %s2619, %s2626
          %s2628 = smul.addr %s20, 16
          %s2629 = scalar_lea.hbm %s4, %s2628
          %s2631 = sshll.u32 %s2621, 4
          %s2632 = int_to_ptr.vmem [resolvable:$true] %s2631
          %2634 = dma.vmem_to_hbm [thread:$0]  %s2632, 16, %s2629, %s2619
        $region81: #{tpu_custom_call.1} parent=72 // pred_fallthru
          _
      $region73: #{tpu_custom_call.1} parent=5 // pred_fallthru
        _
      %p2635 = scmp.le.s32.totalorder 2, %s15
      // Predicated region
      $region82: #{tpu_custom_call.1} parent=5 // pred_check
        %p2636 = pneg %p2635
      $region83: #{tpu_custom_call.1} parent=5 // pred_check_branch
        %2638 = sbr.rel (%p2636) target = $region85
      $region84: #{tpu_custom_call.1} parent=5 // pred_region
        %s2639 = ssub.s32 %s15, 2
        // Predicated region
        $region86: #{tpu_custom_call.1} parent=84 // pred_check
          %p2640 = pneg %p133
        $region87: #{tpu_custom_call.1} parent=84 // pred_check_branch
          %2642 = sbr.rel (%p2640) target = $region89
        $region88: #{tpu_custom_call.1} parent=84 // pred_region
          %s2643 = sand.u32 %s118, 1
          %s2644 = scalar_lea.sflag [#allocation5], %s2643
          %s2645 = sand.u32 %s118, 1
          %s2646 = scalar_lea.vmem [#allocation4], %s2645
          %2647 = dma.done %s2644, 16
        $region89: #{tpu_custom_call.1} parent=84 // pred_fallthru
          _
      $region85: #{tpu_custom_call.1} parent=5 // pred_fallthru
        _
    $region6: #{tpu_custom_call.1} parent=1 // loop_footer
      %s19 = sadd.s32 1, %s15
    $region7: #{tpu_custom_call.1} parent=1 // loop_footer_branch
      %14 = sbr.rel target = $region3
    $region8: #{tpu_custom_call.1} parent=1 // loop_exit
      _
    %2648 = vsyncpa [#allocation5], 1
    %s2649 = scalar_lea.sflag [#allocation5], 1
    %2650 = vsyncpa %s2649, 1

</llo_original>
